<compile_context>
chip_gen: v7x
topology: tpu7x:2x2x1
jax: 0.10.0
libtpu: 0.0.40
codegen_flags: <defaults>
</compile_context>

<pallas_src>
import jax
import jax.numpy as jnp
from jax import lax
from jax.experimental import pallas as pl
from jax.experimental.pallas import tpu as pltpu

# Small shapes consistent with the module's forward()
VOCAB = 50   # vocab_size
EMB = 16     # embedding_dim
HID = 32     # hidden_dim
OUT = 4      # output_dim
B = 2        # batch
T = 8        # sequence length

VPAD = 128   # vocab rows padded to one full lane width for the one-hot compare
OPAD = 128   # classifier output padded to one full lane width (unmasked stores)


def grammar_checker_forward(tokens, packed):
    """tokens: (B, T) int32 token ids -> (B, T, OUT) float32 logits."""
    Bb, Tt = tokens.shape
    H = packed["whh_f"].shape[0]
    H4 = 4 * H
    Vp = packed["emb_proj"].shape[0]
    Op = packed["w_fc"].shape[1]

    # Batch-major flat column (row = b*T + t): free row-major reshape.
    tok_col = tokens.reshape(-1, 1).astype(jnp.int32)

    def kernel(tok_ref, ep_ref, bih_ref, whh_f_ref, whh_b_ref,
               wfc_ref, bfc_ref, out_ref):
        # ---- 1) one-hot gather + input projection, ONE MXU matmul (both dirs) ---
        # onehot[r, v] = (token_r == v); out-of-range tokens -> all-zero row (safe).
        iota = lax.broadcasted_iota(jnp.int32, (Bb * Tt, Vp), 1)
        onehot = (tok_ref[...] == iota).astype(jnp.float32)          # (B*T, Vp)
        # xp_bm[:, 0:4H] = fwd input gates, xp_bm[:, 4H:8H] = bwd input gates.
        # b_ih already contains b_ih + b_hh summed (PyTorch keeps them separate).
        xp_bm = (jnp.dot(onehot, ep_ref[...],
                         preferred_element_type=jnp.float32)
                 + bih_ref[...])                                      # (B*T, 8H)

        # Static row reorder batch-major -> time-major (row = t*B + b); one-shot,
        # off the recurrence critical path.
        xp = jnp.concatenate(
            [xp_bm[b * Tt + t:b * Tt + t + 1, :]
             for t in range(Tt) for b in range(Bb)], axis=0)          # (T*B, 8H)

        whh_f = whh_f_ref[...]
        whh_b = whh_b_ref[...]

        h_f = jnp.zeros((Bb, H), jnp.float32)
        c_f = jnp.zeros((Bb, H), jnp.float32)
        h_b = jnp.zeros((Bb, H), jnp.float32)
        c_b = jnp.zeros((Bb, H), jnp.float32)

        hf_steps = [None] * Tt   # indexed by real time
        hb_steps = [None] * Tt

        # ---- 2) fused, fully-unrolled forward + backward recurrence --------------
        for t in range(Tt):
            tb = Tt - 1 - t
            x_f = xp[t * Bb:(t + 1) * Bb, 0:H4]            # (B, 4H) fwd @ time t
            x_b = xp[tb * Bb:(tb + 1) * Bb, H4:2 * H4]     # (B, 4H) bwd @ time tb

            g_f = x_f + jnp.dot(h_f, whh_f, preferred_element_type=jnp.float32)
            g_b = x_b + jnp.dot(h_b, whh_b, preferred_element_type=jnp.float32)

            # Fuse nonlinearities for both directions: (2B, 4H) = (4, 128) tile,
            # one sigmoid pass + one tanh pass + one tanh(c) pass per step.
            g = jnp.concatenate([g_f, g_b], axis=0)
            sig = jax.nn.sigmoid(g)
            th = jnp.tanh(g)
            i_g = sig[:, 0 * H:1 * H]
            f_g = sig[:, 1 * H:2 * H]
            g_g = th[:, 2 * H:3 * H]
            o_g = sig[:, 3 * H:4 * H]

            c_cat = jnp.concatenate([c_f, c_b], axis=0)    # (2B, H)
            c_new = f_g * c_cat + i_g * g_g
            h_new = o_g * jnp.tanh(c_new)

            h_f, h_b = h_new[0:Bb, :], h_new[Bb:2 * Bb, :]
            c_f, c_b = c_new[0:Bb, :], c_new[Bb:2 * Bb, :]

            hf_steps[t] = h_f        # register-resident; no VMEM stores here
            hb_steps[tb] = h_b

        # ---- 3) assemble (B*T, 2H) batch-major activations from registers --------
        def gather_dir(steps):
            return jnp.concatenate(
                [jnp.concatenate([steps[t][b:b + 1, :] for t in range(Tt)], axis=0)
                 for b in range(Bb)], axis=0)               # (B*T, H)

        hcat = jnp.concatenate([gather_dir(hf_steps), gather_dir(hb_steps)],
                               axis=1)                       # (B*T, 2H)

        # ---- 4) dropout (eval-mode identity) + Linear, lane-padded output --------
        out_ref[...] = (jnp.dot(hcat, wfc_ref[...],
                                preferred_element_type=jnp.float32)
                        + bfc_ref[...])                      # (B*T, 128), unmasked vst

    vmem = pl.BlockSpec(memory_space=pltpu.MemorySpace.VMEM)

    out2d = pl.pallas_call(
        kernel,
        out_shape=jax.ShapeDtypeStruct((Bb * Tt, Op), jnp.float32),
        in_specs=[vmem] * 7,
        out_specs=vmem,
    )(tok_col, packed["emb_proj"], packed["b_ih"], packed["whh_f"],
      packed["whh_b"], packed["w_fc"], packed["b_fc"])

    # Batch-major rows -> slice padding lanes, free row-major reshape to (B, T, OUT).
    return out2d[:, :OUT].reshape(Bb, Tt, OUT)


def pack_params(p):
    """One-time, off-hot-path packing:
       * emb_proj = embedding @ [W_ih_fwd | W_ih_bwd], zero-padded to 128 vocab rows
       * b_ih = combined (b_ih + b_hh) biases for both directions, concatenated
       * classifier zero-padded to 128 output lanes."""
    wih = jnp.concatenate([p["wih_f"], p["wih_b"]], axis=1)            # (E, 8H)
    emb_proj = jnp.dot(p["embedding"], wih)                            # (V, 8H)
    emb_proj = jnp.zeros((VPAD, 8 * HID), jnp.float32).at[:VOCAB, :].set(emb_proj)
    b_ih = jnp.concatenate([p["b_f"], p["b_b"]], axis=1)               # (1, 8H)
    w_fc = jnp.zeros((2 * HID, OPAD), jnp.float32).at[:, :OUT].set(p["w_fc"])
    b_fc = jnp.zeros((1, OPAD), jnp.float32).at[:, :OUT].set(p["b_fc"])
    return dict(emb_proj=emb_proj, b_ih=b_ih,
                whh_f=p["whh_f"], whh_b=p["whh_b"],
                w_fc=w_fc, b_fc=b_fc)


def init_params(key):
    ks = jax.random.split(key, 9)
    scale = 1.0 / jnp.sqrt(jnp.float32(HID))

    def u(k, shape):
        return jax.random.uniform(k, shape, jnp.float32, -scale, scale)

    return dict(
        embedding=jax.random.normal(ks[0], (VOCAB, EMB), jnp.float32) * 0.1,
        # Per-direction LSTM weights (gate order [i, f, g, o]); biases are b_ih+b_hh combined.
        wih_f=u(ks[1], (EMB, 4 * HID)),
        whh_f=u(ks[2], (HID, 4 * HID)),
        b_f=u(ks[3], (1, 4 * HID)),
        wih_b=u(ks[4], (EMB, 4 * HID)),
        whh_b=u(ks[5], (HID, 4 * HID)),
        b_b=u(ks[6], (1, 4 * HID)),
        w_fc=u(ks[7], (2 * HID, OUT)),
        b_fc=u(ks[8], (1, OUT)),
    )


def reference_forward(tokens, params):
    """Pure-JAX reference with identical semantics (for validation)."""
    emb = jnp.take(params["embedding"], tokens, axis=0)  # (B, T, E)
    H = HID

    def run_dir(xs, wih, whh, b, reverse):
        if reverse:
            xs = xs[:, ::-1, :]

        def step(carry, x_t):
            h, c = carry
            gates = x_t @ wih + h @ whh + b
            i = jax.nn.sigmoid(gates[:, :H])
            f = jax.nn.sigmoid(gates[:, H:2 * H])
            g = jnp.tanh(gates[:, 2 * H:3 * H])
            o = jax.nn.sigmoid(gates[:, 3 * H:])
            c = f * c + i * g
            h = o * jnp.tanh(c)
            return (h, c), h

        h0 = jnp.zeros((xs.shape[0], H), jnp.float32)
        _, hs = lax.scan(step, (h0, h0), jnp.transpose(xs, (1, 0, 2)))
        hs = jnp.transpose(hs, (1, 0, 2))  # (B, T, H)
        if reverse:
            hs = hs[:, ::-1, :]
        return hs

    hf = run_dir(emb, params["wih_f"], params["whh_f"], params["b_f"], False)
    hb = run_dir(emb, params["wih_b"], params["whh_b"], params["b_b"], True)
    hcat = jnp.concatenate([hf, hb], axis=-1)
    return hcat @ params["w_fc"] + params["b_fc"]


if __name__ == "__main__":
    key = jax.random.PRNGKey(0)
    kp, kx = jax.random.split(key)
    params = init_params(kp)
    packed = pack_params(params)
    tokens = jax.random.randint(kx, (B, T), 0, VOCAB, dtype=jnp.int32)

    fwd = jax.jit(grammar_checker_forward)
    out = fwd(tokens, packed)
    out = jax.block_until_ready(out)

    ref = reference_forward(tokens, params)
    assert out.shape == (B, T, OUT), out.shape
    assert jnp.allclose(out, ref, atol=1e-4, rtol=1e-4), "kernel does not match reference"
    print("KERNEL_OK")
</pallas_src>

<mosaic_0001>
module attributes {stable_mosaic.version = 11 : i64} {
  func.func @kernel(%arg0: memref<16x1xi32, #tpu.memory_space<vmem>>, %arg1: memref<128x256xf32, #tpu.memory_space<vmem>>, %arg2: memref<1x256xf32, #tpu.memory_space<vmem>>, %arg3: memref<32x128xf32, #tpu.memory_space<vmem>>, %arg4: memref<32x128xf32, #tpu.memory_space<vmem>>, %arg5: memref<64x128xf32, #tpu.memory_space<vmem>>, %arg6: memref<1x128xf32, #tpu.memory_space<vmem>>, %arg7: memref<16x128xf32, #tpu.memory_space<vmem>>) attributes {dimension_semantics = [], scalar_prefetch = 0 : i64, scratch_operands = 0 : i64, tpu.core_type = #tpu.core_type<tc>} {
    %0 = tpu.iota {dimensions = array<i32: 1>} : vector<16x128xi32>
    %c0 = arith.constant 0 : index
    %c0_0 = arith.constant 0 : index
    %1 = vector.load %arg0[%c0, %c0_0] : memref<16x1xi32, #tpu.memory_space<vmem>>, vector<16x1xi32>
    %2 = vector.broadcast %1 : vector<16x1xi32> to vector<16x128xi32>
    %3 = arith.cmpi eq, %2, %0 : vector<16x128xi32>
    %4 = arith.extui %3 : vector<16x128xi1> to vector<16x128xi32>
    %5 = arith.sitofp %4 : vector<16x128xi32> to vector<16x128xf32>
    %c0_1 = arith.constant 0 : index
    %c0_2 = arith.constant 0 : index
    %6 = vector.load %arg1[%c0_1, %c0_2] : memref<128x256xf32, #tpu.memory_space<vmem>>, vector<128x256xf32>
    %cst = arith.constant dense<0.000000e+00> : vector<16x256xf32>
    %7 = tpu.matmul %5, %6, %cst {dimension_numbers = #tpu.dot_dimension_numbers<[1], [0], [0], [1], [0, 0, 1, 1], [], []>} : vector<16x128xf32>, vector<128x256xf32>, vector<16x256xf32> -> vector<16x256xf32>
    %c0_3 = arith.constant 0 : index
    %c0_4 = arith.constant 0 : index
    %8 = vector.load %arg2[%c0_3, %c0_4] : memref<1x256xf32, #tpu.memory_space<vmem>>, vector<1x256xf32>
    %9 = vector.broadcast %8 : vector<1x256xf32> to vector<16x256xf32>
    %10 = arith.addf %7, %9 : vector<16x256xf32>
    %11 = vector.extract_strided_slice %10 {offsets = [0, 0], sizes = [1, 256], strides = [1, 1]} : vector<16x256xf32> to vector<1x256xf32>
    %12 = vector.extract_strided_slice %10 {offsets = [8, 0], sizes = [1, 256], strides = [1, 1]} : vector<16x256xf32> to vector<1x256xf32>
    %13 = vector.extract_strided_slice %10 {offsets = [1, 0], sizes = [1, 256], strides = [1, 1]} : vector<16x256xf32> to vector<1x256xf32>
    %14 = vector.extract_strided_slice %10 {offsets = [9, 0], sizes = [1, 256], strides = [1, 1]} : vector<16x256xf32> to vector<1x256xf32>
    %15 = vector.extract_strided_slice %10 {offsets = [2, 0], sizes = [1, 256], strides = [1, 1]} : vector<16x256xf32> to vector<1x256xf32>
    %16 = vector.extract_strided_slice %10 {offsets = [10, 0], sizes = [1, 256], strides = [1, 1]} : vector<16x256xf32> to vector<1x256xf32>
    %17 = vector.extract_strided_slice %10 {offsets = [3, 0], sizes = [1, 256], strides = [1, 1]} : vector<16x256xf32> to vector<1x256xf32>
    %18 = vector.extract_strided_slice %10 {offsets = [11, 0], sizes = [1, 256], strides = [1, 1]} : vector<16x256xf32> to vector<1x256xf32>
    %19 = vector.extract_strided_slice %10 {offsets = [4, 0], sizes = [1, 256], strides = [1, 1]} : vector<16x256xf32> to vector<1x256xf32>
    %20 = vector.extract_strided_slice %10 {offsets = [12, 0], sizes = [1, 256], strides = [1, 1]} : vector<16x256xf32> to vector<1x256xf32>
    %21 = vector.extract_strided_slice %10 {offsets = [5, 0], sizes = [1, 256], strides = [1, 1]} : vector<16x256xf32> to vector<1x256xf32>
    %22 = vector.extract_strided_slice %10 {offsets = [13, 0], sizes = [1, 256], strides = [1, 1]} : vector<16x256xf32> to vector<1x256xf32>
    %23 = vector.extract_strided_slice %10 {offsets = [6, 0], sizes = [1, 256], strides = [1, 1]} : vector<16x256xf32> to vector<1x256xf32>
    %24 = vector.extract_strided_slice %10 {offsets = [14, 0], sizes = [1, 256], strides = [1, 1]} : vector<16x256xf32> to vector<1x256xf32>
    %25 = vector.extract_strided_slice %10 {offsets = [7, 0], sizes = [1, 256], strides = [1, 1]} : vector<16x256xf32> to vector<1x256xf32>
    %26 = vector.extract_strided_slice %10 {offsets = [15, 0], sizes = [1, 256], strides = [1, 1]} : vector<16x256xf32> to vector<1x256xf32>
    %27 = tpu.concatenate %11, %12, %13, %14, %15, %16, %17, %18, %19, %20, %21, %22, %23, %24, %25, %26 in 0 : vector<1x256xf32>, vector<1x256xf32>, vector<1x256xf32>, vector<1x256xf32>, vector<1x256xf32>, vector<1x256xf32>, vector<1x256xf32>, vector<1x256xf32>, vector<1x256xf32>, vector<1x256xf32>, vector<1x256xf32>, vector<1x256xf32>, vector<1x256xf32>, vector<1x256xf32>, vector<1x256xf32>, vector<1x256xf32> -> vector<16x256xf32>
    %c0_5 = arith.constant 0 : index
    %c0_6 = arith.constant 0 : index
    %28 = vector.load %arg3[%c0_5, %c0_6] : memref<32x128xf32, #tpu.memory_space<vmem>>, vector<32x128xf32>
    %c0_7 = arith.constant 0 : index
    %c0_8 = arith.constant 0 : index
    %29 = vector.load %arg4[%c0_7, %c0_8] : memref<32x128xf32, #tpu.memory_space<vmem>>, vector<32x128xf32>
    %cst_9 = arith.constant 0.000000e+00 : f32
    %30 = vector.broadcast %cst_9 : f32 to vector<2x32xf32>
    %cst_10 = arith.constant 0.000000e+00 : f32
    %31 = vector.broadcast %cst_10 : f32 to vector<2x32xf32>
    %cst_11 = arith.constant 0.000000e+00 : f32
    %32 = vector.broadcast %cst_11 : f32 to vector<2x32xf32>
    %cst_12 = arith.constant 0.000000e+00 : f32
    %33 = vector.broadcast %cst_12 : f32 to vector<2x32xf32>
    %34 = vector.extract_strided_slice %27 {offsets = [0, 0], sizes = [2, 128], strides = [1, 1]} : vector<16x256xf32> to vector<2x128xf32>
    %35 = vector.extract_strided_slice %27 {offsets = [14, 128], sizes = [2, 128], strides = [1, 1]} : vector<16x256xf32> to vector<2x128xf32>
    %cst_13 = arith.constant dense<0.000000e+00> : vector<2x128xf32>
    %36 = tpu.matmul %30, %28, %cst_13 {dimension_numbers = #tpu.dot_dimension_numbers<[1], [0], [0], [1], [0, 0, 1, 1], [], []>} : vector<2x32xf32>, vector<32x128xf32>, vector<2x128xf32> -> vector<2x128xf32>
    %37 = arith.addf %34, %36 : vector<2x128xf32>
    %cst_14 = arith.constant dense<0.000000e+00> : vector<2x128xf32>
    %38 = tpu.matmul %32, %29, %cst_14 {dimension_numbers = #tpu.dot_dimension_numbers<[1], [0], [0], [1], [0, 0, 1, 1], [], []>} : vector<2x32xf32>, vector<32x128xf32>, vector<2x128xf32> -> vector<2x128xf32>
    %39 = arith.addf %35, %38 : vector<2x128xf32>
    %40 = tpu.concatenate %37, %39 in 0 : vector<2x128xf32>, vector<2x128xf32> -> vector<4x128xf32>
    %41 = arith.negf %40 : vector<4x128xf32>
    %42 = math.exp %41 : vector<4x128xf32>
    %cst_15 = arith.constant 1.000000e+00 : f32
    %43 = vector.broadcast %cst_15 : f32 to vector<4x128xf32>
    %44 = arith.addf %43, %42 : vector<4x128xf32>
    %45 = arith.divf %43, %44 : vector<4x128xf32>
    %46 = math.tanh %40 : vector<4x128xf32>
    %47 = vector.extract_strided_slice %45 {offsets = [0, 0], sizes = [4, 32], strides = [1, 1]} : vector<4x128xf32> to vector<4x32xf32>
    %48 = vector.extract_strided_slice %45 {offsets = [0, 32], sizes = [4, 32], strides = [1, 1]} : vector<4x128xf32> to vector<4x32xf32>
    %49 = vector.extract_strided_slice %46 {offsets = [0, 64], sizes = [4, 32], strides = [1, 1]} : vector<4x128xf32> to vector<4x32xf32>
    %50 = vector.extract_strided_slice %45 {offsets = [0, 96], sizes = [4, 32], strides = [1, 1]} : vector<4x128xf32> to vector<4x32xf32>
    %51 = tpu.concatenate %31, %33 in 0 : vector<2x32xf32>, vector<2x32xf32> -> vector<4x32xf32>
    %52 = arith.mulf %48, %51 : vector<4x32xf32>
    %53 = arith.mulf %47, %49 : vector<4x32xf32>
    %54 = arith.addf %52, %53 : vector<4x32xf32>
    %55 = math.tanh %54 : vector<4x32xf32>
    %56 = arith.mulf %50, %55 : vector<4x32xf32>
    %57 = vector.extract_strided_slice %56 {offsets = [0, 0], sizes = [2, 32], strides = [1, 1]} : vector<4x32xf32> to vector<2x32xf32>
    %58 = vector.extract_strided_slice %56 {offsets = [2, 0], sizes = [2, 32], strides = [1, 1]} : vector<4x32xf32> to vector<2x32xf32>
    %59 = vector.extract_strided_slice %54 {offsets = [0, 0], sizes = [2, 32], strides = [1, 1]} : vector<4x32xf32> to vector<2x32xf32>
    %60 = vector.extract_strided_slice %54 {offsets = [2, 0], sizes = [2, 32], strides = [1, 1]} : vector<4x32xf32> to vector<2x32xf32>
    %61 = vector.extract_strided_slice %27 {offsets = [2, 0], sizes = [2, 128], strides = [1, 1]} : vector<16x256xf32> to vector<2x128xf32>
    %62 = vector.extract_strided_slice %27 {offsets = [12, 128], sizes = [2, 128], strides = [1, 1]} : vector<16x256xf32> to vector<2x128xf32>
    %cst_16 = arith.constant dense<0.000000e+00> : vector<2x128xf32>
    %63 = tpu.matmul %57, %28, %cst_16 {dimension_numbers = #tpu.dot_dimension_numbers<[1], [0], [0], [1], [0, 0, 1, 1], [], []>} : vector<2x32xf32>, vector<32x128xf32>, vector<2x128xf32> -> vector<2x128xf32>
    %64 = arith.addf %61, %63 : vector<2x128xf32>
    %cst_17 = arith.constant dense<0.000000e+00> : vector<2x128xf32>
    %65 = tpu.matmul %58, %29, %cst_17 {dimension_numbers = #tpu.dot_dimension_numbers<[1], [0], [0], [1], [0, 0, 1, 1], [], []>} : vector<2x32xf32>, vector<32x128xf32>, vector<2x128xf32> -> vector<2x128xf32>
    %66 = arith.addf %62, %65 : vector<2x128xf32>
    %67 = tpu.concatenate %64, %66 in 0 : vector<2x128xf32>, vector<2x128xf32> -> vector<4x128xf32>
    %68 = arith.negf %67 : vector<4x128xf32>
    %69 = math.exp %68 : vector<4x128xf32>
    %cst_18 = arith.constant 1.000000e+00 : f32
    %70 = vector.broadcast %cst_18 : f32 to vector<4x128xf32>
    %71 = arith.addf %70, %69 : vector<4x128xf32>
    %72 = arith.divf %70, %71 : vector<4x128xf32>
    %73 = math.tanh %67 : vector<4x128xf32>
    %74 = vector.extract_strided_slice %72 {offsets = [0, 0], sizes = [4, 32], strides = [1, 1]} : vector<4x128xf32> to vector<4x32xf32>
    %75 = vector.extract_strided_slice %72 {offsets = [0, 32], sizes = [4, 32], strides = [1, 1]} : vector<4x128xf32> to vector<4x32xf32>
    %76 = vector.extract_strided_slice %73 {offsets = [0, 64], sizes = [4, 32], strides = [1, 1]} : vector<4x128xf32> to vector<4x32xf32>
    %77 = vector.extract_strided_slice %72 {offsets = [0, 96], sizes = [4, 32], strides = [1, 1]} : vector<4x128xf32> to vector<4x32xf32>
    %78 = tpu.concatenate %59, %60 in 0 : vector<2x32xf32>, vector<2x32xf32> -> vector<4x32xf32>
    %79 = arith.mulf %75, %78 : vector<4x32xf32>
    %80 = arith.mulf %74, %76 : vector<4x32xf32>
    %81 = arith.addf %79, %80 : vector<4x32xf32>
    %82 = math.tanh %81 : vector<4x32xf32>
    %83 = arith.mulf %77, %82 : vector<4x32xf32>
    %84 = vector.extract_strided_slice %83 {offsets = [0, 0], sizes = [2, 32], strides = [1, 1]} : vector<4x32xf32> to vector<2x32xf32>
    %85 = vector.extract_strided_slice %83 {offsets = [2, 0], sizes = [2, 32], strides = [1, 1]} : vector<4x32xf32> to vector<2x32xf32>
    %86 = vector.extract_strided_slice %81 {offsets = [0, 0], sizes = [2, 32], strides = [1, 1]} : vector<4x32xf32> to vector<2x32xf32>
    %87 = vector.extract_strided_slice %81 {offsets = [2, 0], sizes = [2, 32], strides = [1, 1]} : vector<4x32xf32> to vector<2x32xf32>
    %88 = vector.extract_strided_slice %27 {offsets = [4, 0], sizes = [2, 128], strides = [1, 1]} : vector<16x256xf32> to vector<2x128xf32>
    %89 = vector.extract_strided_slice %27 {offsets = [10, 128], sizes = [2, 128], strides = [1, 1]} : vector<16x256xf32> to vector<2x128xf32>
    %cst_19 = arith.constant dense<0.000000e+00> : vector<2x128xf32>
    %90 = tpu.matmul %84, %28, %cst_19 {dimension_numbers = #tpu.dot_dimension_numbers<[1], [0], [0], [1], [0, 0, 1, 1], [], []>} : vector<2x32xf32>, vector<32x128xf32>, vector<2x128xf32> -> vector<2x128xf32>
    %91 = arith.addf %88, %90 : vector<2x128xf32>
    %cst_20 = arith.constant dense<0.000000e+00> : vector<2x128xf32>
    %92 = tpu.matmul %85, %29, %cst_20 {dimension_numbers = #tpu.dot_dimension_numbers<[1], [0], [0], [1], [0, 0, 1, 1], [], []>} : vector<2x32xf32>, vector<32x128xf32>, vector<2x128xf32> -> vector<2x128xf32>
    %93 = arith.addf %89, %92 : vector<2x128xf32>
    %94 = tpu.concatenate %91, %93 in 0 : vector<2x128xf32>, vector<2x128xf32> -> vector<4x128xf32>
    %95 = arith.negf %94 : vector<4x128xf32>
    %96 = math.exp %95 : vector<4x128xf32>
    %cst_21 = arith.constant 1.000000e+00 : f32
    %97 = vector.broadcast %cst_21 : f32 to vector<4x128xf32>
    %98 = arith.addf %97, %96 : vector<4x128xf32>
    %99 = arith.divf %97, %98 : vector<4x128xf32>
    %100 = math.tanh %94 : vector<4x128xf32>
    %101 = vector.extract_strided_slice %99 {offsets = [0, 0], sizes = [4, 32], strides = [1, 1]} : vector<4x128xf32> to vector<4x32xf32>
    %102 = vector.extract_strided_slice %99 {offsets = [0, 32], sizes = [4, 32], strides = [1, 1]} : vector<4x128xf32> to vector<4x32xf32>
    %103 = vector.extract_strided_slice %100 {offsets = [0, 64], sizes = [4, 32], strides = [1, 1]} : vector<4x128xf32> to vector<4x32xf32>
    %104 = vector.extract_strided_slice %99 {offsets = [0, 96], sizes = [4, 32], strides = [1, 1]} : vector<4x128xf32> to vector<4x32xf32>
    %105 = tpu.concatenate %86, %87 in 0 : vector<2x32xf32>, vector<2x32xf32> -> vector<4x32xf32>
    %106 = arith.mulf %102, %105 : vector<4x32xf32>
    %107 = arith.mulf %101, %103 : vector<4x32xf32>
    %108 = arith.addf %106, %107 : vector<4x32xf32>
    %109 = math.tanh %108 : vector<4x32xf32>
    %110 = arith.mulf %104, %109 : vector<4x32xf32>
    %111 = vector.extract_strided_slice %110 {offsets = [0, 0], sizes = [2, 32], strides = [1, 1]} : vector<4x32xf32> to vector<2x32xf32>
    %112 = vector.extract_strided_slice %110 {offsets = [2, 0], sizes = [2, 32], strides = [1, 1]} : vector<4x32xf32> to vector<2x32xf32>
    %113 = vector.extract_strided_slice %108 {offsets = [0, 0], sizes = [2, 32], strides = [1, 1]} : vector<4x32xf32> to vector<2x32xf32>
    %114 = vector.extract_strided_slice %108 {offsets = [2, 0], sizes = [2, 32], strides = [1, 1]} : vector<4x32xf32> to vector<2x32xf32>
    %115 = vector.extract_strided_slice %27 {offsets = [6, 0], sizes = [2, 128], strides = [1, 1]} : vector<16x256xf32> to vector<2x128xf32>
    %116 = vector.extract_strided_slice %27 {offsets = [8, 128], sizes = [2, 128], strides = [1, 1]} : vector<16x256xf32> to vector<2x128xf32>
    %cst_22 = arith.constant dense<0.000000e+00> : vector<2x128xf32>
    %117 = tpu.matmul %111, %28, %cst_22 {dimension_numbers = #tpu.dot_dimension_numbers<[1], [0], [0], [1], [0, 0, 1, 1], [], []>} : vector<2x32xf32>, vector<32x128xf32>, vector<2x128xf32> -> vector<2x128xf32>
    %118 = arith.addf %115, %117 : vector<2x128xf32>
    %cst_23 = arith.constant dense<0.000000e+00> : vector<2x128xf32>
    %119 = tpu.matmul %112, %29, %cst_23 {dimension_numbers = #tpu.dot_dimension_numbers<[1], [0], [0], [1], [0, 0, 1, 1], [], []>} : vector<2x32xf32>, vector<32x128xf32>, vector<2x128xf32> -> vector<2x128xf32>
    %120 = arith.addf %116, %119 : vector<2x128xf32>
    %121 = tpu.concatenate %118, %120 in 0 : vector<2x128xf32>, vector<2x128xf32> -> vector<4x128xf32>
    %122 = arith.negf %121 : vector<4x128xf32>
    %123 = math.exp %122 : vector<4x128xf32>
    %cst_24 = arith.constant 1.000000e+00 : f32
    %124 = vector.broadcast %cst_24 : f32 to vector<4x128xf32>
    %125 = arith.addf %124, %123 : vector<4x128xf32>
    %126 = arith.divf %124, %125 : vector<4x128xf32>
    %127 = math.tanh %121 : vector<4x128xf32>
    %128 = vector.extract_strided_slice %126 {offsets = [0, 0], sizes = [4, 32], strides = [1, 1]} : vector<4x128xf32> to vector<4x32xf32>
    %129 = vector.extract_strided_slice %126 {offsets = [0, 32], sizes = [4, 32], strides = [1, 1]} : vector<4x128xf32> to vector<4x32xf32>
    %130 = vector.extract_strided_slice %127 {offsets = [0, 64], sizes = [4, 32], strides = [1, 1]} : vector<4x128xf32> to vector<4x32xf32>
    %131 = vector.extract_strided_slice %126 {offsets = [0, 96], sizes = [4, 32], strides = [1, 1]} : vector<4x128xf32> to vector<4x32xf32>
    %132 = tpu.concatenate %113, %114 in 0 : vector<2x32xf32>, vector<2x32xf32> -> vector<4x32xf32>
    %133 = arith.mulf %129, %132 : vector<4x32xf32>
    %134 = arith.mulf %128, %130 : vector<4x32xf32>
    %135 = arith.addf %133, %134 : vector<4x32xf32>
    %136 = math.tanh %135 : vector<4x32xf32>
    %137 = arith.mulf %131, %136 : vector<4x32xf32>
    %138 = vector.extract_strided_slice %137 {offsets = [0, 0], sizes = [2, 32], strides = [1, 1]} : vector<4x32xf32> to vector<2x32xf32>
    %139 = vector.extract_strided_slice %137 {offsets = [2, 0], sizes = [2, 32], strides = [1, 1]} : vector<4x32xf32> to vector<2x32xf32>
    %140 = vector.extract_strided_slice %135 {offsets = [0, 0], sizes = [2, 32], strides = [1, 1]} : vector<4x32xf32> to vector<2x32xf32>
    %141 = vector.extract_strided_slice %135 {offsets = [2, 0], sizes = [2, 32], strides = [1, 1]} : vector<4x32xf32> to vector<2x32xf32>
    %142 = vector.extract_strided_slice %27 {offsets = [8, 0], sizes = [2, 128], strides = [1, 1]} : vector<16x256xf32> to vector<2x128xf32>
    %143 = vector.extract_strided_slice %27 {offsets = [6, 128], sizes = [2, 128], strides = [1, 1]} : vector<16x256xf32> to vector<2x128xf32>
    %cst_25 = arith.constant dense<0.000000e+00> : vector<2x128xf32>
    %144 = tpu.matmul %138, %28, %cst_25 {dimension_numbers = #tpu.dot_dimension_numbers<[1], [0], [0], [1], [0, 0, 1, 1], [], []>} : vector<2x32xf32>, vector<32x128xf32>, vector<2x128xf32> -> vector<2x128xf32>
    %145 = arith.addf %142, %144 : vector<2x128xf32>
    %cst_26 = arith.constant dense<0.000000e+00> : vector<2x128xf32>
    %146 = tpu.matmul %139, %29, %cst_26 {dimension_numbers = #tpu.dot_dimension_numbers<[1], [0], [0], [1], [0, 0, 1, 1], [], []>} : vector<2x32xf32>, vector<32x128xf32>, vector<2x128xf32> -> vector<2x128xf32>
    %147 = arith.addf %143, %146 : vector<2x128xf32>
    %148 = tpu.concatenate %145, %147 in 0 : vector<2x128xf32>, vector<2x128xf32> -> vector<4x128xf32>
    %149 = arith.negf %148 : vector<4x128xf32>
    %150 = math.exp %149 : vector<4x128xf32>
    %cst_27 = arith.constant 1.000000e+00 : f32
    %151 = vector.broadcast %cst_27 : f32 to vector<4x128xf32>
    %152 = arith.addf %151, %150 : vector<4x128xf32>
    %153 = arith.divf %151, %152 : vector<4x128xf32>
    %154 = math.tanh %148 : vector<4x128xf32>
    %155 = vector.extract_strided_slice %153 {offsets = [0, 0], sizes = [4, 32], strides = [1, 1]} : vector<4x128xf32> to vector<4x32xf32>
    %156 = vector.extract_strided_slice %153 {offsets = [0, 32], sizes = [4, 32], strides = [1, 1]} : vector<4x128xf32> to vector<4x32xf32>
    %157 = vector.extract_strided_slice %154 {offsets = [0, 64], sizes = [4, 32], strides = [1, 1]} : vector<4x128xf32> to vector<4x32xf32>
    %158 = vector.extract_strided_slice %153 {offsets = [0, 96], sizes = [4, 32], strides = [1, 1]} : vector<4x128xf32> to vector<4x32xf32>
    %159 = tpu.concatenate %140, %141 in 0 : vector<2x32xf32>, vector<2x32xf32> -> vector<4x32xf32>
    %160 = arith.mulf %156, %159 : vector<4x32xf32>
    %161 = arith.mulf %155, %157 : vector<4x32xf32>
    %162 = arith.addf %160, %161 : vector<4x32xf32>
    %163 = math.tanh %162 : vector<4x32xf32>
    %164 = arith.mulf %158, %163 : vector<4x32xf32>
    %165 = vector.extract_strided_slice %164 {offsets = [0, 0], sizes = [2, 32], strides = [1, 1]} : vector<4x32xf32> to vector<2x32xf32>
    %166 = vector.extract_strided_slice %164 {offsets = [2, 0], sizes = [2, 32], strides = [1, 1]} : vector<4x32xf32> to vector<2x32xf32>
    %167 = vector.extract_strided_slice %162 {offsets = [0, 0], sizes = [2, 32], strides = [1, 1]} : vector<4x32xf32> to vector<2x32xf32>
    %168 = vector.extract_strided_slice %162 {offsets = [2, 0], sizes = [2, 32], strides = [1, 1]} : vector<4x32xf32> to vector<2x32xf32>
    %169 = vector.extract_strided_slice %27 {offsets = [10, 0], sizes = [2, 128], strides = [1, 1]} : vector<16x256xf32> to vector<2x128xf32>
    %170 = vector.extract_strided_slice %27 {offsets = [4, 128], sizes = [2, 128], strides = [1, 1]} : vector<16x256xf32> to vector<2x128xf32>
    %cst_28 = arith.constant dense<0.000000e+00> : vector<2x128xf32>
    %171 = tpu.matmul %165, %28, %cst_28 {dimension_numbers = #tpu.dot_dimension_numbers<[1], [0], [0], [1], [0, 0, 1, 1], [], []>} : vector<2x32xf32>, vector<32x128xf32>, vector<2x128xf32> -> vector<2x128xf32>
    %172 = arith.addf %169, %171 : vector<2x128xf32>
    %cst_29 = arith.constant dense<0.000000e+00> : vector<2x128xf32>
    %173 = tpu.matmul %166, %29, %cst_29 {dimension_numbers = #tpu.dot_dimension_numbers<[1], [0], [0], [1], [0, 0, 1, 1], [], []>} : vector<2x32xf32>, vector<32x128xf32>, vector<2x128xf32> -> vector<2x128xf32>
    %174 = arith.addf %170, %173 : vector<2x128xf32>
    %175 = tpu.concatenate %172, %174 in 0 : vector<2x128xf32>, vector<2x128xf32> -> vector<4x128xf32>
    %176 = arith.negf %175 : vector<4x128xf32>
    %177 = math.exp %176 : vector<4x128xf32>
    %cst_30 = arith.constant 1.000000e+00 : f32
    %178 = vector.broadcast %cst_30 : f32 to vector<4x128xf32>
    %179 = arith.addf %178, %177 : vector<4x128xf32>
    %180 = arith.divf %178, %179 : vector<4x128xf32>
    %181 = math.tanh %175 : vector<4x128xf32>
    %182 = vector.extract_strided_slice %180 {offsets = [0, 0], sizes = [4, 32], strides = [1, 1]} : vector<4x128xf32> to vector<4x32xf32>
    %183 = vector.extract_strided_slice %180 {offsets = [0, 32], sizes = [4, 32], strides = [1, 1]} : vector<4x128xf32> to vector<4x32xf32>
    %184 = vector.extract_strided_slice %181 {offsets = [0, 64], sizes = [4, 32], strides = [1, 1]} : vector<4x128xf32> to vector<4x32xf32>
    %185 = vector.extract_strided_slice %180 {offsets = [0, 96], sizes = [4, 32], strides = [1, 1]} : vector<4x128xf32> to vector<4x32xf32>
    %186 = tpu.concatenate %167, %168 in 0 : vector<2x32xf32>, vector<2x32xf32> -> vector<4x32xf32>
    %187 = arith.mulf %183, %186 : vector<4x32xf32>
    %188 = arith.mulf %182, %184 : vector<4x32xf32>
    %189 = arith.addf %187, %188 : vector<4x32xf32>
    %190 = math.tanh %189 : vector<4x32xf32>
    %191 = arith.mulf %185, %190 : vector<4x32xf32>
    %192 = vector.extract_strided_slice %191 {offsets = [0, 0], sizes = [2, 32], strides = [1, 1]} : vector<4x32xf32> to vector<2x32xf32>
    %193 = vector.extract_strided_slice %191 {offsets = [2, 0], sizes = [2, 32], strides = [1, 1]} : vector<4x32xf32> to vector<2x32xf32>
    %194 = vector.extract_strided_slice %189 {offsets = [0, 0], sizes = [2, 32], strides = [1, 1]} : vector<4x32xf32> to vector<2x32xf32>
    %195 = vector.extract_strided_slice %189 {offsets = [2, 0], sizes = [2, 32], strides = [1, 1]} : vector<4x32xf32> to vector<2x32xf32>
    %196 = vector.extract_strided_slice %27 {offsets = [12, 0], sizes = [2, 128], strides = [1, 1]} : vector<16x256xf32> to vector<2x128xf32>
    %197 = vector.extract_strided_slice %27 {offsets = [2, 128], sizes = [2, 128], strides = [1, 1]} : vector<16x256xf32> to vector<2x128xf32>
    %cst_31 = arith.constant dense<0.000000e+00> : vector<2x128xf32>
    %198 = tpu.matmul %192, %28, %cst_31 {dimension_numbers = #tpu.dot_dimension_numbers<[1], [0], [0], [1], [0, 0, 1, 1], [], []>} : vector<2x32xf32>, vector<32x128xf32>, vector<2x128xf32> -> vector<2x128xf32>
    %199 = arith.addf %196, %198 : vector<2x128xf32>
    %cst_32 = arith.constant dense<0.000000e+00> : vector<2x128xf32>
    %200 = tpu.matmul %193, %29, %cst_32 {dimension_numbers = #tpu.dot_dimension_numbers<[1], [0], [0], [1], [0, 0, 1, 1], [], []>} : vector<2x32xf32>, vector<32x128xf32>, vector<2x128xf32> -> vector<2x128xf32>
    %201 = arith.addf %197, %200 : vector<2x128xf32>
    %202 = tpu.concatenate %199, %201 in 0 : vector<2x128xf32>, vector<2x128xf32> -> vector<4x128xf32>
    %203 = arith.negf %202 : vector<4x128xf32>
    %204 = math.exp %203 : vector<4x128xf32>
    %cst_33 = arith.constant 1.000000e+00 : f32
    %205 = vector.broadcast %cst_33 : f32 to vector<4x128xf32>
    %206 = arith.addf %205, %204 : vector<4x128xf32>
    %207 = arith.divf %205, %206 : vector<4x128xf32>
    %208 = math.tanh %202 : vector<4x128xf32>
    %209 = vector.extract_strided_slice %207 {offsets = [0, 0], sizes = [4, 32], strides = [1, 1]} : vector<4x128xf32> to vector<4x32xf32>
    %210 = vector.extract_strided_slice %207 {offsets = [0, 32], sizes = [4, 32], strides = [1, 1]} : vector<4x128xf32> to vector<4x32xf32>
    %211 = vector.extract_strided_slice %208 {offsets = [0, 64], sizes = [4, 32], strides = [1, 1]} : vector<4x128xf32> to vector<4x32xf32>
    %212 = vector.extract_strided_slice %207 {offsets = [0, 96], sizes = [4, 32], strides = [1, 1]} : vector<4x128xf32> to vector<4x32xf32>
    %213 = tpu.concatenate %194, %195 in 0 : vector<2x32xf32>, vector<2x32xf32> -> vector<4x32xf32>
    %214 = arith.mulf %210, %213 : vector<4x32xf32>
    %215 = arith.mulf %209, %211 : vector<4x32xf32>
    %216 = arith.addf %214, %215 : vector<4x32xf32>
    %217 = math.tanh %216 : vector<4x32xf32>
    %218 = arith.mulf %212, %217 : vector<4x32xf32>
    %219 = vector.extract_strided_slice %218 {offsets = [0, 0], sizes = [2, 32], strides = [1, 1]} : vector<4x32xf32> to vector<2x32xf32>
    %220 = vector.extract_strided_slice %218 {offsets = [2, 0], sizes = [2, 32], strides = [1, 1]} : vector<4x32xf32> to vector<2x32xf32>
    %221 = vector.extract_strided_slice %216 {offsets = [0, 0], sizes = [2, 32], strides = [1, 1]} : vector<4x32xf32> to vector<2x32xf32>
    %222 = vector.extract_strided_slice %216 {offsets = [2, 0], sizes = [2, 32], strides = [1, 1]} : vector<4x32xf32> to vector<2x32xf32>
    %223 = vector.extract_strided_slice %27 {offsets = [14, 0], sizes = [2, 128], strides = [1, 1]} : vector<16x256xf32> to vector<2x128xf32>
    %224 = vector.extract_strided_slice %27 {offsets = [0, 128], sizes = [2, 128], strides = [1, 1]} : vector<16x256xf32> to vector<2x128xf32>
    %cst_34 = arith.constant dense<0.000000e+00> : vector<2x128xf32>
    %225 = tpu.matmul %219, %28, %cst_34 {dimension_numbers = #tpu.dot_dimension_numbers<[1], [0], [0], [1], [0, 0, 1, 1], [], []>} : vector<2x32xf32>, vector<32x128xf32>, vector<2x128xf32> -> vector<2x128xf32>
    %226 = arith.addf %223, %225 : vector<2x128xf32>
    %cst_35 = arith.constant dense<0.000000e+00> : vector<2x128xf32>
    %227 = tpu.matmul %220, %29, %cst_35 {dimension_numbers = #tpu.dot_dimension_numbers<[1], [0], [0], [1], [0, 0, 1, 1], [], []>} : vector<2x32xf32>, vector<32x128xf32>, vector<2x128xf32> -> vector<2x128xf32>
    %228 = arith.addf %224, %227 : vector<2x128xf32>
    %229 = tpu.concatenate %226, %228 in 0 : vector<2x128xf32>, vector<2x128xf32> -> vector<4x128xf32>
    %230 = arith.negf %229 : vector<4x128xf32>
    %231 = math.exp %230 : vector<4x128xf32>
    %cst_36 = arith.constant 1.000000e+00 : f32
    %232 = vector.broadcast %cst_36 : f32 to vector<4x128xf32>
    %233 = arith.addf %232, %231 : vector<4x128xf32>
    %234 = arith.divf %232, %233 : vector<4x128xf32>
    %235 = math.tanh %229 : vector<4x128xf32>
    %236 = vector.extract_strided_slice %234 {offsets = [0, 0], sizes = [4, 32], strides = [1, 1]} : vector<4x128xf32> to vector<4x32xf32>
    %237 = vector.extract_strided_slice %234 {offsets = [0, 32], sizes = [4, 32], strides = [1, 1]} : vector<4x128xf32> to vector<4x32xf32>
    %238 = vector.extract_strided_slice %235 {offsets = [0, 64], sizes = [4, 32], strides = [1, 1]} : vector<4x128xf32> to vector<4x32xf32>
    %239 = vector.extract_strided_slice %234 {offsets = [0, 96], sizes = [4, 32], strides = [1, 1]} : vector<4x128xf32> to vector<4x32xf32>
    %240 = tpu.concatenate %221, %222 in 0 : vector<2x32xf32>, vector<2x32xf32> -> vector<4x32xf32>
    %241 = arith.mulf %237, %240 : vector<4x32xf32>
    %242 = arith.mulf %236, %238 : vector<4x32xf32>
    %243 = arith.addf %241, %242 : vector<4x32xf32>
    %244 = math.tanh %243 : vector<4x32xf32>
    %245 = arith.mulf %239, %244 : vector<4x32xf32>
    %246 = vector.extract_strided_slice %245 {offsets = [0, 0], sizes = [2, 32], strides = [1, 1]} : vector<4x32xf32> to vector<2x32xf32>
    %247 = vector.extract_strided_slice %245 {offsets = [2, 0], sizes = [2, 32], strides = [1, 1]} : vector<4x32xf32> to vector<2x32xf32>
    %248 = vector.extract_strided_slice %57 {offsets = [0, 0], sizes = [1, 32], strides = [1, 1]} : vector<2x32xf32> to vector<1x32xf32>
    %249 = vector.extract_strided_slice %84 {offsets = [0, 0], sizes = [1, 32], strides = [1, 1]} : vector<2x32xf32> to vector<1x32xf32>
    %250 = vector.extract_strided_slice %111 {offsets = [0, 0], sizes = [1, 32], strides = [1, 1]} : vector<2x32xf32> to vector<1x32xf32>
    %251 = vector.extract_strided_slice %138 {offsets = [0, 0], sizes = [1, 32], strides = [1, 1]} : vector<2x32xf32> to vector<1x32xf32>
    %252 = vector.extract_strided_slice %165 {offsets = [0, 0], sizes = [1, 32], strides = [1, 1]} : vector<2x32xf32> to vector<1x32xf32>
    %253 = vector.extract_strided_slice %192 {offsets = [0, 0], sizes = [1, 32], strides = [1, 1]} : vector<2x32xf32> to vector<1x32xf32>
    %254 = vector.extract_strided_slice %219 {offsets = [0, 0], sizes = [1, 32], strides = [1, 1]} : vector<2x32xf32> to vector<1x32xf32>
    %255 = vector.extract_strided_slice %246 {offsets = [0, 0], sizes = [1, 32], strides = [1, 1]} : vector<2x32xf32> to vector<1x32xf32>
    %256 = tpu.concatenate %248, %249, %250, %251, %252, %253, %254, %255 in 0 : vector<1x32xf32>, vector<1x32xf32>, vector<1x32xf32>, vector<1x32xf32>, vector<1x32xf32>, vector<1x32xf32>, vector<1x32xf32>, vector<1x32xf32> -> vector<8x32xf32>
    %257 = vector.extract_strided_slice %57 {offsets = [1, 0], sizes = [1, 32], strides = [1, 1]} : vector<2x32xf32> to vector<1x32xf32>
    %258 = vector.extract_strided_slice %84 {offsets = [1, 0], sizes = [1, 32], strides = [1, 1]} : vector<2x32xf32> to vector<1x32xf32>
    %259 = vector.extract_strided_slice %111 {offsets = [1, 0], sizes = [1, 32], strides = [1, 1]} : vector<2x32xf32> to vector<1x32xf32>
    %260 = vector.extract_strided_slice %138 {offsets = [1, 0], sizes = [1, 32], strides = [1, 1]} : vector<2x32xf32> to vector<1x32xf32>
    %261 = vector.extract_strided_slice %165 {offsets = [1, 0], sizes = [1, 32], strides = [1, 1]} : vector<2x32xf32> to vector<1x32xf32>
    %262 = vector.extract_strided_slice %192 {offsets = [1, 0], sizes = [1, 32], strides = [1, 1]} : vector<2x32xf32> to vector<1x32xf32>
    %263 = vector.extract_strided_slice %219 {offsets = [1, 0], sizes = [1, 32], strides = [1, 1]} : vector<2x32xf32> to vector<1x32xf32>
    %264 = vector.extract_strided_slice %246 {offsets = [1, 0], sizes = [1, 32], strides = [1, 1]} : vector<2x32xf32> to vector<1x32xf32>
    %265 = tpu.concatenate %257, %258, %259, %260, %261, %262, %263, %264 in 0 : vector<1x32xf32>, vector<1x32xf32>, vector<1x32xf32>, vector<1x32xf32>, vector<1x32xf32>, vector<1x32xf32>, vector<1x32xf32>, vector<1x32xf32> -> vector<8x32xf32>
    %266 = tpu.concatenate %256, %265 in 0 : vector<8x32xf32>, vector<8x32xf32> -> vector<16x32xf32>
    %267 = vector.extract_strided_slice %247 {offsets = [0, 0], sizes = [1, 32], strides = [1, 1]} : vector<2x32xf32> to vector<1x32xf32>
    %268 = vector.extract_strided_slice %220 {offsets = [0, 0], sizes = [1, 32], strides = [1, 1]} : vector<2x32xf32> to vector<1x32xf32>
    %269 = vector.extract_strided_slice %193 {offsets = [0, 0], sizes = [1, 32], strides = [1, 1]} : vector<2x32xf32> to vector<1x32xf32>
    %270 = vector.extract_strided_slice %166 {offsets = [0, 0], sizes = [1, 32], strides = [1, 1]} : vector<2x32xf32> to vector<1x32xf32>
    %271 = vector.extract_strided_slice %139 {offsets = [0, 0], sizes = [1, 32], strides = [1, 1]} : vector<2x32xf32> to vector<1x32xf32>
    %272 = vector.extract_strided_slice %112 {offsets = [0, 0], sizes = [1, 32], strides = [1, 1]} : vector<2x32xf32> to vector<1x32xf32>
    %273 = vector.extract_strided_slice %85 {offsets = [0, 0], sizes = [1, 32], strides = [1, 1]} : vector<2x32xf32> to vector<1x32xf32>
    %274 = vector.extract_strided_slice %58 {offsets = [0, 0], sizes = [1, 32], strides = [1, 1]} : vector<2x32xf32> to vector<1x32xf32>
    %275 = tpu.concatenate %267, %268, %269, %270, %271, %272, %273, %274 in 0 : vector<1x32xf32>, vector<1x32xf32>, vector<1x32xf32>, vector<1x32xf32>, vector<1x32xf32>, vector<1x32xf32>, vector<1x32xf32>, vector<1x32xf32> -> vector<8x32xf32>
    %276 = vector.extract_strided_slice %247 {offsets = [1, 0], sizes = [1, 32], strides = [1, 1]} : vector<2x32xf32> to vector<1x32xf32>
    %277 = vector.extract_strided_slice %220 {offsets = [1, 0], sizes = [1, 32], strides = [1, 1]} : vector<2x32xf32> to vector<1x32xf32>
    %278 = vector.extract_strided_slice %193 {offsets = [1, 0], sizes = [1, 32], strides = [1, 1]} : vector<2x32xf32> to vector<1x32xf32>
    %279 = vector.extract_strided_slice %166 {offsets = [1, 0], sizes = [1, 32], strides = [1, 1]} : vector<2x32xf32> to vector<1x32xf32>
    %280 = vector.extract_strided_slice %139 {offsets = [1, 0], sizes = [1, 32], strides = [1, 1]} : vector<2x32xf32> to vector<1x32xf32>
    %281 = vector.extract_strided_slice %112 {offsets = [1, 0], sizes = [1, 32], strides = [1, 1]} : vector<2x32xf32> to vector<1x32xf32>
    %282 = vector.extract_strided_slice %85 {offsets = [1, 0], sizes = [1, 32], strides = [1, 1]} : vector<2x32xf32> to vector<1x32xf32>
    %283 = vector.extract_strided_slice %58 {offsets = [1, 0], sizes = [1, 32], strides = [1, 1]} : vector<2x32xf32> to vector<1x32xf32>
    %284 = tpu.concatenate %276, %277, %278, %279, %280, %281, %282, %283 in 0 : vector<1x32xf32>, vector<1x32xf32>, vector<1x32xf32>, vector<1x32xf32>, vector<1x32xf32>, vector<1x32xf32>, vector<1x32xf32>, vector<1x32xf32> -> vector<8x32xf32>
    %285 = tpu.concatenate %275, %284 in 0 : vector<8x32xf32>, vector<8x32xf32> -> vector<16x32xf32>
    %286 = tpu.concatenate %266, %285 in 1 : vector<16x32xf32>, vector<16x32xf32> -> vector<16x64xf32>
    %c0_37 = arith.constant 0 : index
    %c0_38 = arith.constant 0 : index
    %287 = vector.load %arg5[%c0_37, %c0_38] : memref<64x128xf32, #tpu.memory_space<vmem>>, vector<64x128xf32>
    %cst_39 = arith.constant dense<0.000000e+00> : vector<16x128xf32>
    %288 = tpu.matmul %286, %287, %cst_39 {dimension_numbers = #tpu.dot_dimension_numbers<[1], [0], [0], [1], [0, 0, 1, 1], [], []>} : vector<16x64xf32>, vector<64x128xf32>, vector<16x128xf32> -> vector<16x128xf32>
    %c0_40 = arith.constant 0 : index
    %c0_41 = arith.constant 0 : index
    %289 = vector.load %arg6[%c0_40, %c0_41] : memref<1x128xf32, #tpu.memory_space<vmem>>, vector<1x128xf32>
    %290 = vector.broadcast %289 : vector<1x128xf32> to vector<16x128xf32>
    %291 = arith.addf %288, %290 : vector<16x128xf32>
    %c0_42 = arith.constant 0 : index
    %c0_43 = arith.constant 0 : index
    %292 = vector.load %arg7[%c0_42, %c0_43] : memref<16x128xf32, #tpu.memory_space<vmem>>, vector<16x128xf32>
    tpu.vector_store %arg7[%c0_42, %c0_43], %291 {strides = array<i32>} : memref<16x128xf32, #tpu.memory_space<vmem>>, vector<16x128xf32>,
    return
  }
}

</mosaic_0001>

<llo_original>
// kernel: grammar_checker_forward.1
$region0: #{grammar_checker_forward.1}
  #allocation0 [shape = 'u32[]', space=smem, size = 0x4, offset = 0x4, fixed_abs, tag = 'smem constant byte address 0x4 - core index']
  #allocation1 [shape = 'u32[144,128]{1,0:T(1,128)}', space=vmem, size = 0x12000, scoped, tag = 'internal scratch']
  %s0 = inlined_call_operand.vmem [shape: s32[16,1], index: 0, kind: input, shape index: {}]
  %s1 = inlined_call_operand.hbm [shape: f32[128,256], index: 1, kind: input, shape index: {}]
  %s2 = inlined_call_operand.vmem [shape: f32[1,256], index: 2, kind: input, shape index: {}]
  %s3 = inlined_call_operand.vmem [shape: f32[32,128], index: 3, kind: input, shape index: {}]
  %s4 = inlined_call_operand.hbm [shape: f32[32,128], index: 4, kind: input, shape index: {}]
  %s5 = inlined_call_operand.hbm [shape: f32[64,128], index: 5, kind: input, shape index: {}]
  %s6 = inlined_call_operand.vmem [shape: f32[1,128], index: 6, kind: input, shape index: {}]
  %s7 = inlined_call_operand.vmem [shape: f32[16,128], index: 7, kind: output, shape index: {}]
  %s8 = sld [smem:[#allocation0]]
  $region50: #{grammar_checker_forward.1} parent=0
    _
  %s10 = ssub.s32 1, %s8
  %s11 = scalar_select 0, %s10, %s8
  $region1: #{grammar_checker_forward.1} parent=0
    #allocation2 [shape = 'u8[131072]{0}', space=vmem, size = 0x20000, scoped, tag = 'input window, operand 1, single buffered']
    #allocation3 [shape = 's32[1]{0}', space=sflag, size = 0x4, scoped, tag = 'scoped memory for grammar_checker_forward.1']
    #allocation4 [shape = 'u8[16384]{0}', space=vmem, size = 0x4000, scoped, tag = 'input window, operand 4, single buffered']
    #allocation5 [shape = 's32[1]{0}', space=sflag, size = 0x4, scoped, tag = 'scoped memory for grammar_checker_forward.1']
    #allocation6 [shape = 'u8[32768]{0}', space=vmem, size = 0x8000, scoped, tag = 'input window, operand 5, single buffered']
    %12 = vsyncpa [#allocation3], 0
    %13 = vsyncpa [#allocation5], 0
    // Predicated region
    $region2: #{grammar_checker_forward.1} parent=1 // pred_check
      _
    $region3: #{grammar_checker_forward.1} parent=1 // pred_check_branch
      %15 = sbr.rel (0) target = $region5
    $region4: #{grammar_checker_forward.1} parent=1 // pred_region
      _
    $region5: #{grammar_checker_forward.1} parent=1 // pred_fallthru
      _
    // Predicated region
    $region6: #{grammar_checker_forward.1} parent=1 // pred_check
      _
    $region7: #{grammar_checker_forward.1} parent=1 // pred_check_branch
      %17 = sbr.rel (0) target = $region9
    $region8: #{grammar_checker_forward.1} parent=1 // pred_region
      %s19 = ssub.s32 4096, 4096
      %20 = vsyncadd [#allocation3], %s19
      %s21 = sshll.u32 [#allocation2], 4
      %s22 = int_to_ptr.vmem [resolvable:$true] %s21
      %27 = dma.hbm_to_vmem [thread:$0]  %s1, 4096, %s22, [#allocation3], 256, 256, 16
    $region9: #{grammar_checker_forward.1} parent=1 // pred_fallthru
      _
    // Predicated region
    $region10: #{grammar_checker_forward.1} parent=1 // pred_check
      _
    $region11: #{grammar_checker_forward.1} parent=1 // pred_check_branch
      %29 = sbr.rel (0) target = $region13
    $region12: #{grammar_checker_forward.1} parent=1 // pred_region
      _
    $region13: #{grammar_checker_forward.1} parent=1 // pred_fallthru
      _
    // Predicated region
    $region14: #{grammar_checker_forward.1} parent=1 // pred_check
      _
    $region15: #{grammar_checker_forward.1} parent=1 // pred_check_branch
      %31 = sbr.rel (0) target = $region17
    $region16: #{grammar_checker_forward.1} parent=1 // pred_region
      _
    $region17: #{grammar_checker_forward.1} parent=1 // pred_fallthru
      _
    // Predicated region
    $region18: #{grammar_checker_forward.1} parent=1 // pred_check
      _
    $region19: #{grammar_checker_forward.1} parent=1 // pred_check_branch
      %33 = sbr.rel (0) target = $region21
    $region20: #{grammar_checker_forward.1} parent=1 // pred_region
      %s35 = ssub.s32 512, 512
      %36 = vsyncadd [#allocation5], %s35
      %s37 = sshll.u32 [#allocation4], 4
      %s38 = int_to_ptr.vmem [resolvable:$true] %s37
      %43 = dma.hbm_to_vmem [thread:$0]  %s4, 512, %s38, [#allocation5], 128, 128, 8
    $region21: #{grammar_checker_forward.1} parent=1 // pred_fallthru
      _
    // Predicated region
    $region22: #{grammar_checker_forward.1} parent=1 // pred_check
      _
    $region23: #{grammar_checker_forward.1} parent=1 // pred_check_branch
      %45 = sbr.rel (0) target = $region25
    $region24: #{grammar_checker_forward.1} parent=1 // pred_region
      %s47 = ssub.s32 1024, 1024
      %48 = vsyncadd [#allocation5], %s47
      %s49 = sshll.u32 [#allocation6], 4
      %s50 = int_to_ptr.vmem [resolvable:$true] %s49
      %55 = dma.hbm_to_vmem [thread:$0]  %s5, 1024, %s50, [#allocation5], 128, 128, 8
    $region25: #{grammar_checker_forward.1} parent=1 // pred_fallthru
      _
    // Predicated region
    $region26: #{grammar_checker_forward.1} parent=1 // pred_check
      _
    $region27: #{grammar_checker_forward.1} parent=1 // pred_check_branch
      %57 = sbr.rel (0) target = $region29
    $region28: #{grammar_checker_forward.1} parent=1 // pred_region
      _
    $region29: #{grammar_checker_forward.1} parent=1 // pred_fallthru
      _
    // Predicated region
    $region30: #{grammar_checker_forward.1} parent=1 // pred_check
      _
    $region31: #{grammar_checker_forward.1} parent=1 // pred_check_branch
      %59 = sbr.rel (0) target = $region33
    $region32: #{grammar_checker_forward.1} parent=1 // pred_region
      %60 = dma.done [#allocation3], 4096
    $region33: #{grammar_checker_forward.1} parent=1 // pred_fallthru
      _
    // Predicated region
    $region34: #{grammar_checker_forward.1} parent=1 // pred_check
      _
    $region35: #{grammar_checker_forward.1} parent=1 // pred_check_branch
      %62 = sbr.rel (0) target = $region37
    $region36: #{grammar_checker_forward.1} parent=1 // pred_region
      %63 = dma.done [#allocation5], 512
    $region37: #{grammar_checker_forward.1} parent=1 // pred_fallthru
      _
    // Predicated region
    $region38: #{grammar_checker_forward.1} parent=1 // pred_check
      _
    $region39: #{grammar_checker_forward.1} parent=1 // pred_check_branch
      %65 = sbr.rel (0) target = $region41
    $region40: #{grammar_checker_forward.1} parent=1 // pred_region
      %66 = dma.done [#allocation5], 1024
    $region41: #{grammar_checker_forward.1} parent=1 // pred_fallthru
      _
    %v67 = vlaneseq
    %v68 = vand.u32 %v67, 127
    %v69 = vld [vmem:[%s0] sm:$0xff]
    %v70 = vld [vmem:[%s0 + $0x8] sm:$0xff]
    %71 = vset.pattern.permute.xlu0 0
    %72 = vperm.xlu0 %71, %v69
    %v73 = vpop.permute.xlu0 %72
    %74 = vset.pattern.permute.xlu0 0
    %75 = vperm.xlu0 %74, %v70
    %v76 = vpop.permute.xlu0 %75
    %vm77 = vcmp.eq.s32.totalorder %v73, %v68
    %vm78 = vcmp.eq.s32.totalorder %v76, %v68
    %v79 = vsel %vm77, 1, 0
    %v80 = vsel %vm78, 1, 0
    %v81 = vcvt.s32.f32 %v79
    %v82 = vcvt.s32.f32 %v80
    %v83 = vld [vmem:[#allocation2] sm:$0xff]
    %v84 = vld [vmem:[#allocation2 + $0x8] sm:$0xff]
    %v85 = vld [vmem:[#allocation2 + $0x10] sm:$0xff]
    %v86 = vld [vmem:[#allocation2 + $0x18] sm:$0xff]
    %v87 = vld [vmem:[#allocation2 + $0x20] sm:$0xff]
    %v88 = vld [vmem:[#allocation2 + $0x28] sm:$0xff]
    %v89 = vld [vmem:[#allocation2 + $0x30] sm:$0xff]
    %v90 = vld [vmem:[#allocation2 + $0x38] sm:$0xff]
    %v91 = vld [vmem:[#allocation2 + $0x40] sm:$0xff]
    %v92 = vld [vmem:[#allocation2 + $0x48] sm:$0xff]
    %v93 = vld [vmem:[#allocation2 + $0x50] sm:$0xff]
    %v94 = vld [vmem:[#allocation2 + $0x58] sm:$0xff]
    %v95 = vld [vmem:[#allocation2 + $0x60] sm:$0xff]
    %v96 = vld [vmem:[#allocation2 + $0x68] sm:$0xff]
    %v97 = vld [vmem:[#allocation2 + $0x70] sm:$0xff]
    %v98 = vld [vmem:[#allocation2 + $0x78] sm:$0xff]
    %v99 = vld [vmem:[#allocation2 + $0x80] sm:$0xff]
    %v100 = vld [vmem:[#allocation2 + $0x88] sm:$0xff]
    %v101 = vld [vmem:[#allocation2 + $0x90] sm:$0xff]
    %v102 = vld [vmem:[#allocation2 + $0x98] sm:$0xff]
    %v103 = vld [vmem:[#allocation2 + $0xa0] sm:$0xff]
    %v104 = vld [vmem:[#allocation2 + $0xa8] sm:$0xff]
    %v105 = vld [vmem:[#allocation2 + $0xb0] sm:$0xff]
    %v106 = vld [vmem:[#allocation2 + $0xb8] sm:$0xff]
    %v107 = vld [vmem:[#allocation2 + $0xc0] sm:$0xff]
    %v108 = vld [vmem:[#allocation2 + $0xc8] sm:$0xff]
    %v109 = vld [vmem:[#allocation2 + $0xd0] sm:$0xff]
    %v110 = vld [vmem:[#allocation2 + $0xd8] sm:$0xff]
    %v111 = vld [vmem:[#allocation2 + $0xe0] sm:$0xff]
    %v112 = vld [vmem:[#allocation2 + $0xe8] sm:$0xff]
    %v113 = vld [vmem:[#allocation2 + $0xf0] sm:$0xff]
    %v114 = vld [vmem:[#allocation2 + $0xf8] sm:$0xff]
    %v115 = vld [vmem:[%s2] sm:$0x3]
    %v117 = vlaneseq
    %v118 = vshrl.u32 %v117, 7
    %v119 = vsub.s32 0, %v118
    %v120 = vrot.slane %v115, %v119
    %v121 = vlaneseq
    %v122 = vshrl.u32 %v121, 7
    %v123 = vsub.s32 1, %v122
    %v124 = vrot.slane %v115, %v123
    %127 = vmatprep.subr.mxu0 %v84
    %128 = vmatpush1.msra.mxu0 %v83
    %129 = vmatprep.subr.mxu0 %v86
    %130 = vmatpush1.msra.mxu0 %v85
    %131 = vmatprep.subr.mxu0 %v88
    %132 = vmatpush1.msra.mxu0 %v87
    %133 = vmatprep.subr.mxu0 %v90
    %134 = vmatpush1.msra.mxu0 %v89
    %135 = vmatprep.subr.mxu0 %v92
    %136 = vmatpush1.msra.mxu0 %v91
    %137 = vmatprep.subr.mxu0 %v94
    %138 = vmatpush1.msra.mxu0 %v93
    %139 = vmatprep.subr.mxu0 %v96
    %140 = vmatpush1.msra.mxu0 %v95
    %141 = vmatprep.subr.mxu0 %v98
    %142 = vmatpush1.msra.mxu0 %v97
    %143 = vmatprep.subr.mxu0 %v100
    %144 = vmatpush1.msra.mxu0 %v99
    %145 = vmatprep.subr.mxu0 %v102
    %146 = vmatpush1.msra.mxu0 %v101
    %147 = vmatprep.subr.mxu0 %v104
    %148 = vmatpush1.msra.mxu0 %v103
    %149 = vmatprep.subr.mxu0 %v106
    %150 = vmatpush1.msra.mxu0 %v105
    %151 = vmatprep.subr.mxu0 %v108
    %152 = vmatpush1.msra.mxu0 %v107
    %153 = vmatprep.subr.mxu0 %v110
    %154 = vmatpush1.msra.mxu0 %v109
    %155 = vmatprep.subr.mxu0 %v112
    %156 = vmatpush1.msra.mxu0 %v111
    %157 = vmatprep.subr.mxu0 %v114
    %158 = vmatpush1.msra.mxu0 %v113
    %159 = vmatprep.subr.mxu0 0.0
    %160 = vmatpush1.msra.mxu0 0.0
    %161 = vmatprep.subr.mxu0 0.0
    %162 = vmatpush1.msra.mxu0 0.0
    %163 = vmatprep.subr.mxu0 0.0
    %164 = vmatpush1.msra.mxu0 0.0
    %165 = vmatprep.subr.mxu0 0.0
    %166 = vmatpush1.msra.mxu0 0.0
    %167 = vmatprep.subr.mxu0 0.0
    %168 = vmatpush1.msra.mxu0 0.0
    %169 = vmatprep.subr.mxu0 0.0
    %170 = vmatpush1.msra.mxu0 0.0
    %171 = vmatprep.subr.mxu0 0.0
    %172 = vmatpush1.msra.mxu0 0.0
    %173 = vmatprep.subr.mxu0 0.0
    %174 = vmatpush1.msra.mxu0 0.0
    %175 = vmatprep.subr.mxu0 0.0
    %176 = vmatpush1.msra.mxu0 0.0
    %177 = vmatprep.subr.mxu0 0.0
    %178 = vmatpush1.msra.mxu0 0.0
    %179 = vmatprep.subr.mxu0 0.0
    %180 = vmatpush1.msra.mxu0 0.0
    %181 = vmatprep.subr.mxu0 0.0
    %182 = vmatpush1.msra.mxu0 0.0
    %183 = vmatprep.subr.mxu0 0.0
    %184 = vmatpush1.msra.mxu0 0.0
    %185 = vmatprep.subr.mxu0 0.0
    %186 = vmatpush1.msra.mxu0 0.0
    %187 = vmatprep.subr.mxu0 0.0
    %188 = vmatpush1.msra.mxu0 0.0
    %189 = vmatprep.subr.mxu0 0.0
    %190 = vmatpush1.msra.mxu0 0.0
    %191 = vmatprep.mubr.f32.mxu0 0.0
    %192 = vmatmul.mubr.f32.gmra.mrb[0].mxu0 %v81
    %v193 = vpop.f32.mrb[0].mxu0
    %v194 = vadd.f32 %v120, %v193
    %v195 = vpop.f32.mrb[0].mxu0
    %v196 = vadd.f32 %v124, %v195
    %197 = vmatprep.mubr.f32.mxu0 0.0
    %198 = vmatmul.mubr.f32.gmra.mrb[0].mxu0 %v82
    %v199 = vpop.f32.mrb[0].mxu0
    %v200 = vadd.f32 %v120, %v199
    %v201 = vpop.f32.mrb[0].mxu0
    %v202 = vadd.f32 %v124, %v201
    %203 = vdwg.mxu0
    %v206 = vrot.slane %v200, 7
    %v207 = vrot.slane %v202, 7
    %v212 = vrot.slane %v194, 7
    %v213 = vrot.slane %v196, 7
    %v216 = vrot.slane %v200, 6
    %v217 = vrot.slane %v202, 6
    %v220 = vrot.slane %v194, 6
    %v221 = vrot.slane %v196, 6
    %v224 = vrot.slane %v200, 5
    %v225 = vrot.slane %v202, 5
    %v228 = vrot.slane %v194, 5
    %v229 = vrot.slane %v196, 5
    %v232 = vrot.slane %v200, 4
    %v233 = vrot.slane %v202, 4
    %v236 = vrot.slane %v194, 4
    %v237 = vrot.slane %v196, 4
    %v240 = vrot.slane %v200, 3
    %v241 = vrot.slane %v202, 3
    %v244 = vrot.slane %v194, 3
    %v245 = vrot.slane %v196, 3
    %v248 = vrot.slane %v200, 2
    %v249 = vrot.slane %v202, 2
    %v252 = vrot.slane %v194, 2
    %v253 = vrot.slane %v196, 2
    %v256 = vrot.slane %v200, 1
    %v257 = vrot.slane %v202, 1
    %v260 = vrot.slane %v194, 1
    %v261 = vrot.slane %v196, 1
    %vm264 = vcmask 1040384
    %v265 = vsel %vm264, %v194, %v206
    %v266 = vsel %vm264, %v196, %v207
    %vm267 = vcmask 1041408
    %v268 = vsel %vm267, %v265, %v212
    %v269 = vsel %vm267, %v266, %v213
    %vm270 = vcmask 1042432
    %v271 = vsel %vm270, %v268, %v216
    %v272 = vsel %vm270, %v269, %v217
    %vm273 = vcmask 1043456
    %v274 = vsel %vm273, %v271, %v220
    %v275 = vsel %vm273, %v272, %v221
    %vm276 = vcmask 1044480
    %v277 = vsel %vm276, %v274, %v224
    %v278 = vsel %vm276, %v275, %v225
    %vm279 = vcmask 1045504
    %v280 = vsel %vm279, %v277, %v228
    %v281 = vsel %vm279, %v278, %v229
    %vm282 = vcmask 1046528
    %v283 = vsel %vm282, %v280, %v232
    %v284 = vsel %vm282, %v281, %v233
    %v285 = vsel %vm264, %v236, %v240
    %v286 = vsel %vm264, %v237, %v241
    %v287 = vsel %vm267, %v285, %v244
    %v288 = vsel %vm267, %v286, %v245
    %v289 = vsel %vm270, %v287, %v248
    %v290 = vsel %vm270, %v288, %v249
    %v291 = vsel %vm273, %v289, %v252
    %v292 = vsel %vm273, %v290, %v253
    %v293 = vsel %vm276, %v291, %v256
    %v294 = vsel %vm276, %v292, %v257
    %v295 = vsel %vm279, %v293, %v260
    %v296 = vsel %vm279, %v294, %v261
    %v297 = vsel %vm282, %v295, %v200
    %v298 = vsel %vm282, %v296, %v202
    %v299 = vld [vmem:[%s3] sm:$0xff]
    %v300 = vld [vmem:[%s3 + $0x8] sm:$0xff]
    %v301 = vld [vmem:[%s3 + $0x10] sm:$0xff]
    %v302 = vld [vmem:[%s3 + $0x18] sm:$0xff]
    %v303 = vld [vmem:[#allocation4] sm:$0xff]
    %v304 = vld [vmem:[#allocation4 + $0x8] sm:$0xff]
    %v305 = vld [vmem:[#allocation4 + $0x10] sm:$0xff]
    %v306 = vld [vmem:[#allocation4 + $0x18] sm:$0xff]
    %vm307 = vcmask 261120
    %v309 = vsel %vm307, 0.0, 0
    %311 = vmatprep.subr.mxu0 0.0
    %312 = vmatpush1.msra.mxu0 %v299
    %313 = vmatprep.subr.mxu0 0.0
    %314 = vmatpush1.msra.mxu0 %v300
    %315 = vmatprep.subr.mxu0 0.0
    %316 = vmatpush1.msra.mxu0 %v301
    %317 = vmatprep.subr.mxu0 0.0
    %318 = vmatpush1.msra.mxu0 %v302
    %319 = vmatprep.subr.mxu0 0.0
    %320 = vmatpush1.msra.mxu0 0.0
    %321 = vmatprep.subr.mxu0 0.0
    %322 = vmatpush1.msra.mxu0 0.0
    %323 = vmatprep.subr.mxu0 0.0
    %324 = vmatpush1.msra.mxu0 0.0
    %325 = vmatprep.subr.mxu0 0.0
    %326 = vmatpush1.msra.mxu0 0.0
    %327 = vmatprep.subr.mxu0 0.0
    %328 = vmatpush1.msra.mxu0 0.0
    %329 = vmatprep.subr.mxu0 0.0
    %330 = vmatpush1.msra.mxu0 0.0
    %331 = vmatprep.subr.mxu0 0.0
    %332 = vmatpush1.msra.mxu0 0.0
    %333 = vmatprep.subr.mxu0 0.0
    %334 = vmatpush1.msra.mxu0 0.0
    %335 = vmatprep.subr.mxu0 0.0
    %336 = vmatpush1.msra.mxu0 0.0
    %337 = vmatprep.subr.mxu0 0.0
    %338 = vmatpush1.msra.mxu0 0.0
    %339 = vmatprep.subr.mxu0 0.0
    %340 = vmatpush1.msra.mxu0 0.0
    %341 = vmatprep.subr.mxu0 0.0
    %342 = vmatpush1.msra.mxu0 0.0
    %343 = vmatprep.subr.mxu0 0.0
    %344 = vmatpush1.msra.mxu0 0.0
    %345 = vmatprep.subr.mxu0 0.0
    %346 = vmatpush1.msra.mxu0 0.0
    %347 = vmatprep.subr.mxu0 0.0
    %348 = vmatpush1.msra.mxu0 0.0
    %349 = vmatprep.subr.mxu0 0.0
    %350 = vmatpush1.msra.mxu0 0.0
    %351 = vmatprep.subr.mxu0 0.0
    %352 = vmatpush1.msra.mxu0 0.0
    %353 = vmatprep.subr.mxu0 0.0
    %354 = vmatpush1.msra.mxu0 0.0
    %355 = vmatprep.subr.mxu0 0.0
    %356 = vmatpush1.msra.mxu0 0.0
    %357 = vmatprep.subr.mxu0 0.0
    %358 = vmatpush1.msra.mxu0 0.0
    %359 = vmatprep.subr.mxu0 0.0
    %360 = vmatpush1.msra.mxu0 0.0
    %361 = vmatprep.subr.mxu0 0.0
    %362 = vmatpush1.msra.mxu0 0.0
    %363 = vmatprep.subr.mxu0 0.0
    %364 = vmatpush1.msra.mxu0 0.0
    %365 = vmatprep.subr.mxu0 0.0
    %366 = vmatpush1.msra.mxu0 0.0
    %367 = vmatprep.subr.mxu0 0.0
    %368 = vmatpush1.msra.mxu0 0.0
    %369 = vmatprep.subr.mxu0 0.0
    %370 = vmatpush1.msra.mxu0 0.0
    %371 = vmatprep.subr.mxu0 0.0
    %372 = vmatpush1.msra.mxu0 0.0
    %373 = vmatprep.subr.mxu0 0.0
    %374 = vmatpush1.msra.mxu0 0.0
    %375 = vmatprep.mubr.f32.mxu0 0.0
    %376 = vmatmul.mubr.f32.gmra.mrb[0].mxu0 %v309
    %v377 = vpop.f32.mrb[0].mxu0
    %v378 = vadd.f32 0.0, %v377
    %v379 = vpop.f32.mrb[0].mxu0
    %380 = vdwg.mxu0
    %v381 = vadd.f32 %v283, %v378
    %382 = vmatprep.subr.mxu0 0.0
    %383 = vmatpush1.msra.mxu0 %v303
    %384 = vmatprep.subr.mxu0 0.0
    %385 = vmatpush1.msra.mxu0 %v304
    %386 = vmatprep.subr.mxu0 0.0
    %387 = vmatpush1.msra.mxu0 %v305
    %388 = vmatprep.subr.mxu0 0.0
    %389 = vmatpush1.msra.mxu0 %v306
    %390 = vmatprep.subr.mxu0 0.0
    %391 = vmatpush1.msra.mxu0 0.0
    %392 = vmatprep.subr.mxu0 0.0
    %393 = vmatpush1.msra.mxu0 0.0
    %394 = vmatprep.subr.mxu0 0.0
    %395 = vmatpush1.msra.mxu0 0.0
    %396 = vmatprep.subr.mxu0 0.0
    %397 = vmatpush1.msra.mxu0 0.0
    %398 = vmatprep.subr.mxu0 0.0
    %399 = vmatpush1.msra.mxu0 0.0
    %400 = vmatprep.subr.mxu0 0.0
    %401 = vmatpush1.msra.mxu0 0.0
    %402 = vmatprep.subr.mxu0 0.0
    %403 = vmatpush1.msra.mxu0 0.0
    %404 = vmatprep.subr.mxu0 0.0
    %405 = vmatpush1.msra.mxu0 0.0
    %406 = vmatprep.subr.mxu0 0.0
    %407 = vmatpush1.msra.mxu0 0.0
    %408 = vmatprep.subr.mxu0 0.0
    %409 = vmatpush1.msra.mxu0 0.0
    %410 = vmatprep.subr.mxu0 0.0
    %411 = vmatpush1.msra.mxu0 0.0
    %412 = vmatprep.subr.mxu0 0.0
    %413 = vmatpush1.msra.mxu0 0.0
    %414 = vmatprep.subr.mxu0 0.0
    %415 = vmatpush1.msra.mxu0 0.0
    %416 = vmatprep.subr.mxu0 0.0
    %417 = vmatpush1.msra.mxu0 0.0
    %418 = vmatprep.subr.mxu0 0.0
    %419 = vmatpush1.msra.mxu0 0.0
    %420 = vmatprep.subr.mxu0 0.0
    %421 = vmatpush1.msra.mxu0 0.0
    %422 = vmatprep.subr.mxu0 0.0
    %423 = vmatpush1.msra.mxu0 0.0
    %424 = vmatprep.subr.mxu0 0.0
    %425 = vmatpush1.msra.mxu0 0.0
    %426 = vmatprep.subr.mxu0 0.0
    %427 = vmatpush1.msra.mxu0 0.0
    %428 = vmatprep.subr.mxu0 0.0
    %429 = vmatpush1.msra.mxu0 0.0
    %430 = vmatprep.subr.mxu0 0.0
    %431 = vmatpush1.msra.mxu0 0.0
    %432 = vmatprep.subr.mxu0 0.0
    %433 = vmatpush1.msra.mxu0 0.0
    %434 = vmatprep.subr.mxu0 0.0
    %435 = vmatpush1.msra.mxu0 0.0
    %436 = vmatprep.subr.mxu0 0.0
    %437 = vmatpush1.msra.mxu0 0.0
    %438 = vmatprep.subr.mxu0 0.0
    %439 = vmatpush1.msra.mxu0 0.0
    %440 = vmatprep.subr.mxu0 0.0
    %441 = vmatpush1.msra.mxu0 0.0
    %442 = vmatprep.subr.mxu0 0.0
    %443 = vmatpush1.msra.mxu0 0.0
    %444 = vmatprep.subr.mxu0 0.0
    %445 = vmatpush1.msra.mxu0 0.0
    %446 = vmatprep.mubr.f32.mxu0 0.0
    %447 = vmatmul.mubr.f32.gmra.mrb[0].mxu0 %v309
    %v448 = vpop.f32.mrb[0].mxu0
    %v449 = vadd.f32 0.0, %v448
    %v450 = vpop.f32.mrb[0].mxu0
    %451 = vdwg.mxu0
    %v453 = vrot.slane %v449, 2
    %v455 = vadd.f32 %v298, %v453
    %v457 = vrot.slane %v455, 4
    %v459 = vsel %vm267, %v381, %v457
    %v460 = vxor.u32 %v459, 2147483648
    %v461 = vmul.f32 %v460, 1.442695
    %v462 = vpow.pop %v461
    %v463 = vadd.f32 %v462, 1.0
    %v464 = vrcp.pop %v463
    %v465 = vmul.f32 1.0, %v464
    %v466 = vtanh.pop %v459
    %467 = vrot.lane.b32.xlu0 0.0, 32
    %v468 = vpop.permute.xlu0 %467
    %v470 = vmul.f32 %v465, %v468
    %472 = vrot.lane.b32.xlu0 %v466, 64
    %v473 = vpop.permute.xlu0 %472
    %v475 = vmul.f32 %v465, %v473
    %477 = vrot.lane.b32.xlu0 %v475, 32
    %v478 = vpop.permute.xlu0 %477
    %v480 = vadd.f32 %v470, %v478
    %v481 = vtanh.pop %v480
    %483 = vrot.lane.b32.xlu0 %v481, 64
    %v484 = vpop.permute.xlu0 %483
    %v486 = vmul.f32 %v465, %v484
    %488 = vrot.lane.b32.xlu0 %v486, 32
    %v489 = vpop.permute.xlu0 %488
    %v490 = vsel %vm307, %v489, 0
    %492 = vmatprep.subr.mxu0 0.0
    %493 = vmatpush1.msra.mxu0 %v299
    %494 = vmatprep.subr.mxu0 0.0
    %495 = vmatpush1.msra.mxu0 %v300
    %496 = vmatprep.subr.mxu0 0.0
    %497 = vmatpush1.msra.mxu0 %v301
    %498 = vmatprep.subr.mxu0 0.0
    %499 = vmatpush1.msra.mxu0 %v302
    %500 = vmatprep.subr.mxu0 0.0
    %501 = vmatpush1.msra.mxu0 0.0
    %502 = vmatprep.subr.mxu0 0.0
    %503 = vmatpush1.msra.mxu0 0.0
    %504 = vmatprep.subr.mxu0 0.0
    %505 = vmatpush1.msra.mxu0 0.0
    %506 = vmatprep.subr.mxu0 0.0
    %507 = vmatpush1.msra.mxu0 0.0
    %508 = vmatprep.subr.mxu0 0.0
    %509 = vmatpush1.msra.mxu0 0.0
    %510 = vmatprep.subr.mxu0 0.0
    %511 = vmatpush1.msra.mxu0 0.0
    %512 = vmatprep.subr.mxu0 0.0
    %513 = vmatpush1.msra.mxu0 0.0
    %514 = vmatprep.subr.mxu0 0.0
    %515 = vmatpush1.msra.mxu0 0.0
    %516 = vmatprep.subr.mxu0 0.0
    %517 = vmatpush1.msra.mxu0 0.0
    %518 = vmatprep.subr.mxu0 0.0
    %519 = vmatpush1.msra.mxu0 0.0
    %520 = vmatprep.subr.mxu0 0.0
    %521 = vmatpush1.msra.mxu0 0.0
    %522 = vmatprep.subr.mxu0 0.0
    %523 = vmatpush1.msra.mxu0 0.0
    %524 = vmatprep.subr.mxu0 0.0
    %525 = vmatpush1.msra.mxu0 0.0
    %526 = vmatprep.subr.mxu0 0.0
    %527 = vmatpush1.msra.mxu0 0.0
    %528 = vmatprep.subr.mxu0 0.0
    %529 = vmatpush1.msra.mxu0 0.0
    %530 = vmatprep.subr.mxu0 0.0
    %531 = vmatpush1.msra.mxu0 0.0
    %532 = vmatprep.subr.mxu0 0.0
    %533 = vmatpush1.msra.mxu0 0.0
    %534 = vmatprep.subr.mxu0 0.0
    %535 = vmatpush1.msra.mxu0 0.0
    %536 = vmatprep.subr.mxu0 0.0
    %537 = vmatpush1.msra.mxu0 0.0
    %538 = vmatprep.subr.mxu0 0.0
    %539 = vmatpush1.msra.mxu0 0.0
    %540 = vmatprep.subr.mxu0 0.0
    %541 = vmatpush1.msra.mxu0 0.0
    %542 = vmatprep.subr.mxu0 0.0
    %543 = vmatpush1.msra.mxu0 0.0
    %544 = vmatprep.subr.mxu0 0.0
    %545 = vmatpush1.msra.mxu0 0.0
    %546 = vmatprep.subr.mxu0 0.0
    %547 = vmatpush1.msra.mxu0 0.0
    %548 = vmatprep.subr.mxu0 0.0
    %549 = vmatpush1.msra.mxu0 0.0
    %550 = vmatprep.subr.mxu0 0.0
    %551 = vmatpush1.msra.mxu0 0.0
    %552 = vmatprep.subr.mxu0 0.0
    %553 = vmatpush1.msra.mxu0 0.0
    %554 = vmatprep.subr.mxu0 0.0
    %555 = vmatpush1.msra.mxu0 0.0
    %556 = vmatprep.mubr.f32.mxu0 0.0
    %557 = vmatmul.mubr.f32.gmra.mrb[0].mxu0 %v490
    %v558 = vpop.f32.mrb[0].mxu0
    %v559 = vadd.f32 0.0, %v558
    %v560 = vpop.f32.mrb[0].mxu0
    %561 = vdwg.mxu0
    %v563 = vrot.slane %v559, 6
    %v565 = vadd.f32 %v283, %v563
    %v566 = vrot.slane %v486, 2
    %567 = vrot.lane.b32.xlu0 %v566, 32
    %v568 = vpop.permute.xlu0 %567
    %v569 = vsel %vm307, %v568, 0
    %571 = vmatprep.subr.mxu0 0.0
    %572 = vmatpush1.msra.mxu0 %v303
    %573 = vmatprep.subr.mxu0 0.0
    %574 = vmatpush1.msra.mxu0 %v304
    %575 = vmatprep.subr.mxu0 0.0
    %576 = vmatpush1.msra.mxu0 %v305
    %577 = vmatprep.subr.mxu0 0.0
    %578 = vmatpush1.msra.mxu0 %v306
    %579 = vmatprep.subr.mxu0 0.0
    %580 = vmatpush1.msra.mxu0 0.0
    %581 = vmatprep.subr.mxu0 0.0
    %582 = vmatpush1.msra.mxu0 0.0
    %583 = vmatprep.subr.mxu0 0.0
    %584 = vmatpush1.msra.mxu0 0.0
    %585 = vmatprep.subr.mxu0 0.0
    %586 = vmatpush1.msra.mxu0 0.0
    %587 = vmatprep.subr.mxu0 0.0
    %588 = vmatpush1.msra.mxu0 0.0
    %589 = vmatprep.subr.mxu0 0.0
    %590 = vmatpush1.msra.mxu0 0.0
    %591 = vmatprep.subr.mxu0 0.0
    %592 = vmatpush1.msra.mxu0 0.0
    %593 = vmatprep.subr.mxu0 0.0
    %594 = vmatpush1.msra.mxu0 0.0
    %595 = vmatprep.subr.mxu0 0.0
    %596 = vmatpush1.msra.mxu0 0.0
    %597 = vmatprep.subr.mxu0 0.0
    %598 = vmatpush1.msra.mxu0 0.0
    %599 = vmatprep.subr.mxu0 0.0
    %600 = vmatpush1.msra.mxu0 0.0
    %601 = vmatprep.subr.mxu0 0.0
    %602 = vmatpush1.msra.mxu0 0.0
    %603 = vmatprep.subr.mxu0 0.0
    %604 = vmatpush1.msra.mxu0 0.0
    %605 = vmatprep.subr.mxu0 0.0
    %606 = vmatpush1.msra.mxu0 0.0
    %607 = vmatprep.subr.mxu0 0.0
    %608 = vmatpush1.msra.mxu0 0.0
    %609 = vmatprep.subr.mxu0 0.0
    %610 = vmatpush1.msra.mxu0 0.0
    %611 = vmatprep.subr.mxu0 0.0
    %612 = vmatpush1.msra.mxu0 0.0
    %613 = vmatprep.subr.mxu0 0.0
    %614 = vmatpush1.msra.mxu0 0.0
    %615 = vmatprep.subr.mxu0 0.0
    %616 = vmatpush1.msra.mxu0 0.0
    %617 = vmatprep.subr.mxu0 0.0
    %618 = vmatpush1.msra.mxu0 0.0
    %619 = vmatprep.subr.mxu0 0.0
    %620 = vmatpush1.msra.mxu0 0.0
    %621 = vmatprep.subr.mxu0 0.0
    %622 = vmatpush1.msra.mxu0 0.0
    %623 = vmatprep.subr.mxu0 0.0
    %624 = vmatpush1.msra.mxu0 0.0
    %625 = vmatprep.subr.mxu0 0.0
    %626 = vmatpush1.msra.mxu0 0.0
    %627 = vmatprep.subr.mxu0 0.0
    %628 = vmatpush1.msra.mxu0 0.0
    %629 = vmatprep.subr.mxu0 0.0
    %630 = vmatpush1.msra.mxu0 0.0
    %631 = vmatprep.subr.mxu0 0.0
    %632 = vmatpush1.msra.mxu0 0.0
    %633 = vmatprep.subr.mxu0 0.0
    %634 = vmatpush1.msra.mxu0 0.0
    %635 = vmatprep.mubr.f32.mxu0 0.0
    %636 = vmatmul.mubr.f32.gmra.mrb[0].mxu0 %v569
    %v637 = vpop.f32.mrb[0].mxu0
    %v638 = vadd.f32 0.0, %v637
    %v639 = vpop.f32.mrb[0].mxu0
    %640 = vdwg.mxu0
    %v642 = vrot.slane %v638, 4
    %v644 = vadd.f32 %v298, %v642
    %v646 = vrot.slane %v565, 2
    %v649 = vrot.slane %v644, 2
    %v651 = vsel %vm267, %v646, %v649
    %v652 = vxor.u32 %v651, 2147483648
    %v653 = vmul.f32 %v652, 1.442695
    %v654 = vpow.pop %v653
    %v655 = vadd.f32 %v654, 1.0
    %v656 = vrcp.pop %v655
    %v657 = vmul.f32 1.0, %v656
    %v658 = vtanh.pop %v651
    %v659 = vmul.f32 %v657, %v480
    %661 = vrot.lane.b32.xlu0 %v658, 64
    %v662 = vpop.permute.xlu0 %661
    %v664 = vmul.f32 %v657, %v662
    %666 = vrot.lane.b32.xlu0 %v664, 32
    %v667 = vpop.permute.xlu0 %666
    %v669 = vadd.f32 %v659, %v667
    %v670 = vtanh.pop %v669
    %672 = vrot.lane.b32.xlu0 %v670, 64
    %v673 = vpop.permute.xlu0 %672
    %v675 = vmul.f32 %v657, %v673
    %677 = vrot.lane.b32.xlu0 %v675, 32
    %v678 = vpop.permute.xlu0 %677
    %v679 = vsel %vm307, %v678, 0
    %681 = vmatprep.subr.mxu0 0.0
    %682 = vmatpush1.msra.mxu0 %v299
    %683 = vmatprep.subr.mxu0 0.0
    %684 = vmatpush1.msra.mxu0 %v300
    %685 = vmatprep.subr.mxu0 0.0
    %686 = vmatpush1.msra.mxu0 %v301
    %687 = vmatprep.subr.mxu0 0.0
    %688 = vmatpush1.msra.mxu0 %v302
    %689 = vmatprep.subr.mxu0 0.0
    %690 = vmatpush1.msra.mxu0 0.0
    %691 = vmatprep.subr.mxu0 0.0
    %692 = vmatpush1.msra.mxu0 0.0
    %693 = vmatprep.subr.mxu0 0.0
    %694 = vmatpush1.msra.mxu0 0.0
    %695 = vmatprep.subr.mxu0 0.0
    %696 = vmatpush1.msra.mxu0 0.0
    %697 = vmatprep.subr.mxu0 0.0
    %698 = vmatpush1.msra.mxu0 0.0
    %699 = vmatprep.subr.mxu0 0.0
    %700 = vmatpush1.msra.mxu0 0.0
    %701 = vmatprep.subr.mxu0 0.0
    %702 = vmatpush1.msra.mxu0 0.0
    %703 = vmatprep.subr.mxu0 0.0
    %704 = vmatpush1.msra.mxu0 0.0
    %705 = vmatprep.subr.mxu0 0.0
    %706 = vmatpush1.msra.mxu0 0.0
    %707 = vmatprep.subr.mxu0 0.0
    %708 = vmatpush1.msra.mxu0 0.0
    %709 = vmatprep.subr.mxu0 0.0
    %710 = vmatpush1.msra.mxu0 0.0
    %711 = vmatprep.subr.mxu0 0.0
    %712 = vmatpush1.msra.mxu0 0.0
    %713 = vmatprep.subr.mxu0 0.0
    %714 = vmatpush1.msra.mxu0 0.0
    %715 = vmatprep.subr.mxu0 0.0
    %716 = vmatpush1.msra.mxu0 0.0
    %717 = vmatprep.subr.mxu0 0.0
    %718 = vmatpush1.msra.mxu0 0.0
    %719 = vmatprep.subr.mxu0 0.0
    %720 = vmatpush1.msra.mxu0 0.0
    %721 = vmatprep.subr.mxu0 0.0
    %722 = vmatpush1.msra.mxu0 0.0
    %723 = vmatprep.subr.mxu0 0.0
    %724 = vmatpush1.msra.mxu0 0.0
    %725 = vmatprep.subr.mxu0 0.0
    %726 = vmatpush1.msra.mxu0 0.0
    %727 = vmatprep.subr.mxu0 0.0
    %728 = vmatpush1.msra.mxu0 0.0
    %729 = vmatprep.subr.mxu0 0.0
    %730 = vmatpush1.msra.mxu0 0.0
    %731 = vmatprep.subr.mxu0 0.0
    %732 = vmatpush1.msra.mxu0 0.0
    %733 = vmatprep.subr.mxu0 0.0
    %734 = vmatpush1.msra.mxu0 0.0
    %735 = vmatprep.subr.mxu0 0.0
    %736 = vmatpush1.msra.mxu0 0.0
    %737 = vmatprep.subr.mxu0 0.0
    %738 = vmatpush1.msra.mxu0 0.0
    %739 = vmatprep.subr.mxu0 0.0
    %740 = vmatpush1.msra.mxu0 0.0
    %741 = vmatprep.subr.mxu0 0.0
    %742 = vmatpush1.msra.mxu0 0.0
    %743 = vmatprep.subr.mxu0 0.0
    %744 = vmatpush1.msra.mxu0 0.0
    %745 = vmatprep.mubr.f32.mxu0 0.0
    %746 = vmatmul.mubr.f32.gmra.mrb[0].mxu0 %v679
    %v747 = vpop.f32.mrb[0].mxu0
    %v748 = vadd.f32 0.0, %v747
    %v749 = vpop.f32.mrb[0].mxu0
    %750 = vdwg.mxu0
    %v752 = vrot.slane %v748, 4
    %v754 = vadd.f32 %v283, %v752
    %v755 = vrot.slane %v675, 2
    %756 = vrot.lane.b32.xlu0 %v755, 32
    %v757 = vpop.permute.xlu0 %756
    %v758 = vsel %vm307, %v757, 0
    %760 = vmatprep.subr.mxu0 0.0
    %761 = vmatpush1.msra.mxu0 %v303
    %762 = vmatprep.subr.mxu0 0.0
    %763 = vmatpush1.msra.mxu0 %v304
    %764 = vmatprep.subr.mxu0 0.0
    %765 = vmatpush1.msra.mxu0 %v305
    %766 = vmatprep.subr.mxu0 0.0
    %767 = vmatpush1.msra.mxu0 %v306
    %768 = vmatprep.subr.mxu0 0.0
    %769 = vmatpush1.msra.mxu0 0.0
    %770 = vmatprep.subr.mxu0 0.0
    %771 = vmatpush1.msra.mxu0 0.0
    %772 = vmatprep.subr.mxu0 0.0
    %773 = vmatpush1.msra.mxu0 0.0
    %774 = vmatprep.subr.mxu0 0.0
    %775 = vmatpush1.msra.mxu0 0.0
    %776 = vmatprep.subr.mxu0 0.0
    %777 = vmatpush1.msra.mxu0 0.0
    %778 = vmatprep.subr.mxu0 0.0
    %779 = vmatpush1.msra.mxu0 0.0
    %780 = vmatprep.subr.mxu0 0.0
    %781 = vmatpush1.msra.mxu0 0.0
    %782 = vmatprep.subr.mxu0 0.0
    %783 = vmatpush1.msra.mxu0 0.0
    %784 = vmatprep.subr.mxu0 0.0
    %785 = vmatpush1.msra.mxu0 0.0
    %786 = vmatprep.subr.mxu0 0.0
    %787 = vmatpush1.msra.mxu0 0.0
    %788 = vmatprep.subr.mxu0 0.0
    %789 = vmatpush1.msra.mxu0 0.0
    %790 = vmatprep.subr.mxu0 0.0
    %791 = vmatpush1.msra.mxu0 0.0
    %792 = vmatprep.subr.mxu0 0.0
    %793 = vmatpush1.msra.mxu0 0.0
    %794 = vmatprep.subr.mxu0 0.0
    %795 = vmatpush1.msra.mxu0 0.0
    %796 = vmatprep.subr.mxu0 0.0
    %797 = vmatpush1.msra.mxu0 0.0
    %798 = vmatprep.subr.mxu0 0.0
    %799 = vmatpush1.msra.mxu0 0.0
    %800 = vmatprep.subr.mxu0 0.0
    %801 = vmatpush1.msra.mxu0 0.0
    %802 = vmatprep.subr.mxu0 0.0
    %803 = vmatpush1.msra.mxu0 0.0
    %804 = vmatprep.subr.mxu0 0.0
    %805 = vmatpush1.msra.mxu0 0.0
    %806 = vmatprep.subr.mxu0 0.0
    %807 = vmatpush1.msra.mxu0 0.0
    %808 = vmatprep.subr.mxu0 0.0
    %809 = vmatpush1.msra.mxu0 0.0
    %810 = vmatprep.subr.mxu0 0.0
    %811 = vmatpush1.msra.mxu0 0.0
    %812 = vmatprep.subr.mxu0 0.0
    %813 = vmatpush1.msra.mxu0 0.0
    %814 = vmatprep.subr.mxu0 0.0
    %815 = vmatpush1.msra.mxu0 0.0
    %816 = vmatprep.subr.mxu0 0.0
    %817 = vmatpush1.msra.mxu0 0.0
    %818 = vmatprep.subr.mxu0 0.0
    %819 = vmatpush1.msra.mxu0 0.0
    %820 = vmatprep.subr.mxu0 0.0
    %821 = vmatpush1.msra.mxu0 0.0
    %822 = vmatprep.subr.mxu0 0.0
    %823 = vmatpush1.msra.mxu0 0.0
    %824 = vmatprep.mubr.f32.mxu0 0.0
    %825 = vmatmul.mubr.f32.gmra.mrb[0].mxu0 %v758
    %v826 = vpop.f32.mrb[0].mxu0
    %v827 = vadd.f32 0.0, %v826
    %v828 = vpop.f32.mrb[0].mxu0
    %829 = vdwg.mxu0
    %v831 = vrot.slane %v827, 6
    %v833 = vadd.f32 %v298, %v831
    %v835 = vrot.slane %v754, 4
    %v837 = vsel %vm267, %v835, %v833
    %v838 = vxor.u32 %v837, 2147483648
    %v839 = vmul.f32 %v838, 1.442695
    %v840 = vpow.pop %v839
    %v841 = vadd.f32 %v840, 1.0
    %v842 = vrcp.pop %v841
    %v843 = vmul.f32 1.0, %v842
    %v844 = vtanh.pop %v837
    %v845 = vmul.f32 %v843, %v669
    %847 = vrot.lane.b32.xlu0 %v844, 64
    %v848 = vpop.permute.xlu0 %847
    %v850 = vmul.f32 %v843, %v848
    %852 = vrot.lane.b32.xlu0 %v850, 32
    %v853 = vpop.permute.xlu0 %852
    %v855 = vadd.f32 %v845, %v853
    %v856 = vtanh.pop %v855
    %858 = vrot.lane.b32.xlu0 %v856, 64
    %v859 = vpop.permute.xlu0 %858
    %v861 = vmul.f32 %v843, %v859
    %863 = vrot.lane.b32.xlu0 %v861, 32
    %v864 = vpop.permute.xlu0 %863
    %v865 = vsel %vm307, %v864, 0
    %867 = vmatprep.subr.mxu0 0.0
    %868 = vmatpush1.msra.mxu0 %v299
    %869 = vmatprep.subr.mxu0 0.0
    %870 = vmatpush1.msra.mxu0 %v300
    %871 = vmatprep.subr.mxu0 0.0
    %872 = vmatpush1.msra.mxu0 %v301
    %873 = vmatprep.subr.mxu0 0.0
    %874 = vmatpush1.msra.mxu0 %v302
    %875 = vmatprep.subr.mxu0 0.0
    %876 = vmatpush1.msra.mxu0 0.0
    %877 = vmatprep.subr.mxu0 0.0
    %878 = vmatpush1.msra.mxu0 0.0
    %879 = vmatprep.subr.mxu0 0.0
    %880 = vmatpush1.msra.mxu0 0.0
    %881 = vmatprep.subr.mxu0 0.0
    %882 = vmatpush1.msra.mxu0 0.0
    %883 = vmatprep.subr.mxu0 0.0
    %884 = vmatpush1.msra.mxu0 0.0
    %885 = vmatprep.subr.mxu0 0.0
    %886 = vmatpush1.msra.mxu0 0.0
    %887 = vmatprep.subr.mxu0 0.0
    %888 = vmatpush1.msra.mxu0 0.0
    %889 = vmatprep.subr.mxu0 0.0
    %890 = vmatpush1.msra.mxu0 0.0
    %891 = vmatprep.subr.mxu0 0.0
    %892 = vmatpush1.msra.mxu0 0.0
    %893 = vmatprep.subr.mxu0 0.0
    %894 = vmatpush1.msra.mxu0 0.0
    %895 = vmatprep.subr.mxu0 0.0
    %896 = vmatpush1.msra.mxu0 0.0
    %897 = vmatprep.subr.mxu0 0.0
    %898 = vmatpush1.msra.mxu0 0.0
    %899 = vmatprep.subr.mxu0 0.0
    %900 = vmatpush1.msra.mxu0 0.0
    %901 = vmatprep.subr.mxu0 0.0
    %902 = vmatpush1.msra.mxu0 0.0
    %903 = vmatprep.subr.mxu0 0.0
    %904 = vmatpush1.msra.mxu0 0.0
    %905 = vmatprep.subr.mxu0 0.0
    %906 = vmatpush1.msra.mxu0 0.0
    %907 = vmatprep.subr.mxu0 0.0
    %908 = vmatpush1.msra.mxu0 0.0
    %909 = vmatprep.subr.mxu0 0.0
    %910 = vmatpush1.msra.mxu0 0.0
    %911 = vmatprep.subr.mxu0 0.0
    %912 = vmatpush1.msra.mxu0 0.0
    %913 = vmatprep.subr.mxu0 0.0
    %914 = vmatpush1.msra.mxu0 0.0
    %915 = vmatprep.subr.mxu0 0.0
    %916 = vmatpush1.msra.mxu0 0.0
    %917 = vmatprep.subr.mxu0 0.0
    %918 = vmatpush1.msra.mxu0 0.0
    %919 = vmatprep.subr.mxu0 0.0
    %920 = vmatpush1.msra.mxu0 0.0
    %921 = vmatprep.subr.mxu0 0.0
    %922 = vmatpush1.msra.mxu0 0.0
    %923 = vmatprep.subr.mxu0 0.0
    %924 = vmatpush1.msra.mxu0 0.0
    %925 = vmatprep.subr.mxu0 0.0
    %926 = vmatpush1.msra.mxu0 0.0
    %927 = vmatprep.subr.mxu0 0.0
    %928 = vmatpush1.msra.mxu0 0.0
    %929 = vmatprep.subr.mxu0 0.0
    %930 = vmatpush1.msra.mxu0 0.0
    %931 = vmatprep.mubr.f32.mxu0 0.0
    %932 = vmatmul.mubr.f32.gmra.mrb[0].mxu0 %v865
    %v933 = vpop.f32.mrb[0].mxu0
    %v934 = vadd.f32 0.0, %v933
    %v935 = vpop.f32.mrb[0].mxu0
    %936 = vdwg.mxu0
    %v938 = vrot.slane %v934, 2
    %v940 = vadd.f32 %v283, %v938
    %v941 = vrot.slane %v861, 2
    %942 = vrot.lane.b32.xlu0 %v941, 32
    %v943 = vpop.permute.xlu0 %942
    %v944 = vsel %vm307, %v943, 0
    %946 = vmatprep.subr.mxu0 0.0
    %947 = vmatpush1.msra.mxu0 %v303
    %948 = vmatprep.subr.mxu0 0.0
    %949 = vmatpush1.msra.mxu0 %v304
    %950 = vmatprep.subr.mxu0 0.0
    %951 = vmatpush1.msra.mxu0 %v305
    %952 = vmatprep.subr.mxu0 0.0
    %953 = vmatpush1.msra.mxu0 %v306
    %954 = vmatprep.subr.mxu0 0.0
    %955 = vmatpush1.msra.mxu0 0.0
    %956 = vmatprep.subr.mxu0 0.0
    %957 = vmatpush1.msra.mxu0 0.0
    %958 = vmatprep.subr.mxu0 0.0
    %959 = vmatpush1.msra.mxu0 0.0
    %960 = vmatprep.subr.mxu0 0.0
    %961 = vmatpush1.msra.mxu0 0.0
    %962 = vmatprep.subr.mxu0 0.0
    %963 = vmatpush1.msra.mxu0 0.0
    %964 = vmatprep.subr.mxu0 0.0
    %965 = vmatpush1.msra.mxu0 0.0
    %966 = vmatprep.subr.mxu0 0.0
    %967 = vmatpush1.msra.mxu0 0.0
    %968 = vmatprep.subr.mxu0 0.0
    %969 = vmatpush1.msra.mxu0 0.0
    %970 = vmatprep.subr.mxu0 0.0
    %971 = vmatpush1.msra.mxu0 0.0
    %972 = vmatprep.subr.mxu0 0.0
    %973 = vmatpush1.msra.mxu0 0.0
    %974 = vmatprep.subr.mxu0 0.0
    %975 = vmatpush1.msra.mxu0 0.0
    %976 = vmatprep.subr.mxu0 0.0
    %977 = vmatpush1.msra.mxu0 0.0
    %978 = vmatprep.subr.mxu0 0.0
    %979 = vmatpush1.msra.mxu0 0.0
    %980 = vmatprep.subr.mxu0 0.0
    %981 = vmatpush1.msra.mxu0 0.0
    %982 = vmatprep.subr.mxu0 0.0
    %983 = vmatpush1.msra.mxu0 0.0
    %984 = vmatprep.subr.mxu0 0.0
    %985 = vmatpush1.msra.mxu0 0.0
    %986 = vmatprep.subr.mxu0 0.0
    %987 = vmatpush1.msra.mxu0 0.0
    %988 = vmatprep.subr.mxu0 0.0
    %989 = vmatpush1.msra.mxu0 0.0
    %990 = vmatprep.subr.mxu0 0.0
    %991 = vmatpush1.msra.mxu0 0.0
    %992 = vmatprep.subr.mxu0 0.0
    %993 = vmatpush1.msra.mxu0 0.0
    %994 = vmatprep.subr.mxu0 0.0
    %995 = vmatpush1.msra.mxu0 0.0
    %996 = vmatprep.subr.mxu0 0.0
    %997 = vmatpush1.msra.mxu0 0.0
    %998 = vmatprep.subr.mxu0 0.0
    %999 = vmatpush1.msra.mxu0 0.0
    %1000 = vmatprep.subr.mxu0 0.0
    %1001 = vmatpush1.msra.mxu0 0.0
    %1002 = vmatprep.subr.mxu0 0.0
    %1003 = vmatpush1.msra.mxu0 0.0
    %1004 = vmatprep.subr.mxu0 0.0
    %1005 = vmatpush1.msra.mxu0 0.0
    %1006 = vmatprep.subr.mxu0 0.0
    %1007 = vmatpush1.msra.mxu0 0.0
    %1008 = vmatprep.subr.mxu0 0.0
    %1009 = vmatpush1.msra.mxu0 0.0
    %1010 = vmatprep.mubr.f32.mxu0 0.0
    %1011 = vmatmul.mubr.f32.gmra.mrb[0].mxu0 %v944
    %v1012 = vpop.f32.mrb[0].mxu0
    %v1013 = vadd.f32 0.0, %v1012
    %v1014 = vpop.f32.mrb[0].mxu0
    %1015 = vdwg.mxu0
    %v1016 = vadd.f32 %v298, %v1013
    %v1018 = vrot.slane %v940, 6
    %v1021 = vrot.slane %v1016, 6
    %v1023 = vsel %vm267, %v1018, %v1021
    %v1024 = vxor.u32 %v1023, 2147483648
    %v1025 = vmul.f32 %v1024, 1.442695
    %v1026 = vpow.pop %v1025
    %v1027 = vadd.f32 %v1026, 1.0
    %v1028 = vrcp.pop %v1027
    %v1029 = vmul.f32 1.0, %v1028
    %v1030 = vtanh.pop %v1023
    %v1031 = vmul.f32 %v1029, %v855
    %1033 = vrot.lane.b32.xlu0 %v1030, 64
    %v1034 = vpop.permute.xlu0 %1033
    %v1036 = vmul.f32 %v1029, %v1034
    %1038 = vrot.lane.b32.xlu0 %v1036, 32
    %v1039 = vpop.permute.xlu0 %1038
    %v1041 = vadd.f32 %v1031, %v1039
    %v1042 = vtanh.pop %v1041
    %1044 = vrot.lane.b32.xlu0 %v1042, 64
    %v1045 = vpop.permute.xlu0 %1044
    %v1047 = vmul.f32 %v1029, %v1045
    %1049 = vrot.lane.b32.xlu0 %v1047, 32
    %v1050 = vpop.permute.xlu0 %1049
    %v1051 = vsel %vm307, %v1050, 0
    %1053 = vmatprep.subr.mxu0 0.0
    %1054 = vmatpush1.msra.mxu0 %v299
    %1055 = vmatprep.subr.mxu0 0.0
    %1056 = vmatpush1.msra.mxu0 %v300
    %1057 = vmatprep.subr.mxu0 0.0
    %1058 = vmatpush1.msra.mxu0 %v301
    %1059 = vmatprep.subr.mxu0 0.0
    %1060 = vmatpush1.msra.mxu0 %v302
    %1061 = vmatprep.subr.mxu0 0.0
    %1062 = vmatpush1.msra.mxu0 0.0
    %1063 = vmatprep.subr.mxu0 0.0
    %1064 = vmatpush1.msra.mxu0 0.0
    %1065 = vmatprep.subr.mxu0 0.0
    %1066 = vmatpush1.msra.mxu0 0.0
    %1067 = vmatprep.subr.mxu0 0.0
    %1068 = vmatpush1.msra.mxu0 0.0
    %1069 = vmatprep.subr.mxu0 0.0
    %1070 = vmatpush1.msra.mxu0 0.0
    %1071 = vmatprep.subr.mxu0 0.0
    %1072 = vmatpush1.msra.mxu0 0.0
    %1073 = vmatprep.subr.mxu0 0.0
    %1074 = vmatpush1.msra.mxu0 0.0
    %1075 = vmatprep.subr.mxu0 0.0
    %1076 = vmatpush1.msra.mxu0 0.0
    %1077 = vmatprep.subr.mxu0 0.0
    %1078 = vmatpush1.msra.mxu0 0.0
    %1079 = vmatprep.subr.mxu0 0.0
    %1080 = vmatpush1.msra.mxu0 0.0
    %1081 = vmatprep.subr.mxu0 0.0
    %1082 = vmatpush1.msra.mxu0 0.0
    %1083 = vmatprep.subr.mxu0 0.0
    %1084 = vmatpush1.msra.mxu0 0.0
    %1085 = vmatprep.subr.mxu0 0.0
    %1086 = vmatpush1.msra.mxu0 0.0
    %1087 = vmatprep.subr.mxu0 0.0
    %1088 = vmatpush1.msra.mxu0 0.0
    %1089 = vmatprep.subr.mxu0 0.0
    %1090 = vmatpush1.msra.mxu0 0.0
    %1091 = vmatprep.subr.mxu0 0.0
    %1092 = vmatpush1.msra.mxu0 0.0
    %1093 = vmatprep.subr.mxu0 0.0
    %1094 = vmatpush1.msra.mxu0 0.0
    %1095 = vmatprep.subr.mxu0 0.0
    %1096 = vmatpush1.msra.mxu0 0.0
    %1097 = vmatprep.subr.mxu0 0.0
    %1098 = vmatpush1.msra.mxu0 0.0
    %1099 = vmatprep.subr.mxu0 0.0
    %1100 = vmatpush1.msra.mxu0 0.0
    %1101 = vmatprep.subr.mxu0 0.0
    %1102 = vmatpush1.msra.mxu0 0.0
    %1103 = vmatprep.subr.mxu0 0.0
    %1104 = vmatpush1.msra.mxu0 0.0
    %1105 = vmatprep.subr.mxu0 0.0
    %1106 = vmatpush1.msra.mxu0 0.0
    %1107 = vmatprep.subr.mxu0 0.0
    %1108 = vmatpush1.msra.mxu0 0.0
    %1109 = vmatprep.subr.mxu0 0.0
    %1110 = vmatpush1.msra.mxu0 0.0
    %1111 = vmatprep.subr.mxu0 0.0
    %1112 = vmatpush1.msra.mxu0 0.0
    %1113 = vmatprep.subr.mxu0 0.0
    %1114 = vmatpush1.msra.mxu0 0.0
    %1115 = vmatprep.subr.mxu0 0.0
    %1116 = vmatpush1.msra.mxu0 0.0
    %1117 = vmatprep.mubr.f32.mxu0 0.0
    %1118 = vmatmul.mubr.f32.gmra.mrb[0].mxu0 %v1051
    %v1119 = vpop.f32.mrb[0].mxu0
    %v1120 = vadd.f32 0.0, %v1119
    %v1121 = vpop.f32.mrb[0].mxu0
    %1122 = vdwg.mxu0
    %v1123 = vadd.f32 %v297, %v1120
    %v1124 = vrot.slane %v1047, 2
    %1125 = vrot.lane.b32.xlu0 %v1124, 32
    %v1126 = vpop.permute.xlu0 %1125
    %v1127 = vsel %vm307, %v1126, 0
    %1129 = vmatprep.subr.mxu0 0.0
    %1130 = vmatpush1.msra.mxu0 %v303
    %1131 = vmatprep.subr.mxu0 0.0
    %1132 = vmatpush1.msra.mxu0 %v304
    %1133 = vmatprep.subr.mxu0 0.0
    %1134 = vmatpush1.msra.mxu0 %v305
    %1135 = vmatprep.subr.mxu0 0.0
    %1136 = vmatpush1.msra.mxu0 %v306
    %1137 = vmatprep.subr.mxu0 0.0
    %1138 = vmatpush1.msra.mxu0 0.0
    %1139 = vmatprep.subr.mxu0 0.0
    %1140 = vmatpush1.msra.mxu0 0.0
    %1141 = vmatprep.subr.mxu0 0.0
    %1142 = vmatpush1.msra.mxu0 0.0
    %1143 = vmatprep.subr.mxu0 0.0
    %1144 = vmatpush1.msra.mxu0 0.0
    %1145 = vmatprep.subr.mxu0 0.0
    %1146 = vmatpush1.msra.mxu0 0.0
    %1147 = vmatprep.subr.mxu0 0.0
    %1148 = vmatpush1.msra.mxu0 0.0
    %1149 = vmatprep.subr.mxu0 0.0
    %1150 = vmatpush1.msra.mxu0 0.0
    %1151 = vmatprep.subr.mxu0 0.0
    %1152 = vmatpush1.msra.mxu0 0.0
    %1153 = vmatprep.subr.mxu0 0.0
    %1154 = vmatpush1.msra.mxu0 0.0
    %1155 = vmatprep.subr.mxu0 0.0
    %1156 = vmatpush1.msra.mxu0 0.0
    %1157 = vmatprep.subr.mxu0 0.0
    %1158 = vmatpush1.msra.mxu0 0.0
    %1159 = vmatprep.subr.mxu0 0.0
    %1160 = vmatpush1.msra.mxu0 0.0
    %1161 = vmatprep.subr.mxu0 0.0
    %1162 = vmatpush1.msra.mxu0 0.0
    %1163 = vmatprep.subr.mxu0 0.0
    %1164 = vmatpush1.msra.mxu0 0.0
    %1165 = vmatprep.subr.mxu0 0.0
    %1166 = vmatpush1.msra.mxu0 0.0
    %1167 = vmatprep.subr.mxu0 0.0
    %1168 = vmatpush1.msra.mxu0 0.0
    %1169 = vmatprep.subr.mxu0 0.0
    %1170 = vmatpush1.msra.mxu0 0.0
    %1171 = vmatprep.subr.mxu0 0.0
    %1172 = vmatpush1.msra.mxu0 0.0
    %1173 = vmatprep.subr.mxu0 0.0
    %1174 = vmatpush1.msra.mxu0 0.0
    %1175 = vmatprep.subr.mxu0 0.0
    %1176 = vmatpush1.msra.mxu0 0.0
    %1177 = vmatprep.subr.mxu0 0.0
    %1178 = vmatpush1.msra.mxu0 0.0
    %1179 = vmatprep.subr.mxu0 0.0
    %1180 = vmatpush1.msra.mxu0 0.0
    %1181 = vmatprep.subr.mxu0 0.0
    %1182 = vmatpush1.msra.mxu0 0.0
    %1183 = vmatprep.subr.mxu0 0.0
    %1184 = vmatpush1.msra.mxu0 0.0
    %1185 = vmatprep.subr.mxu0 0.0
    %1186 = vmatpush1.msra.mxu0 0.0
    %1187 = vmatprep.subr.mxu0 0.0
    %1188 = vmatpush1.msra.mxu0 0.0
    %1189 = vmatprep.subr.mxu0 0.0
    %1190 = vmatpush1.msra.mxu0 0.0
    %1191 = vmatprep.subr.mxu0 0.0
    %1192 = vmatpush1.msra.mxu0 0.0
    %1193 = vmatprep.mubr.f32.mxu0 0.0
    %1194 = vmatmul.mubr.f32.gmra.mrb[0].mxu0 %v1127
    %v1195 = vpop.f32.mrb[0].mxu0
    %v1196 = vadd.f32 0.0, %v1195
    %v1197 = vpop.f32.mrb[0].mxu0
    %1198 = vdwg.mxu0
    %v1200 = vrot.slane %v1196, 2
    %v1202 = vadd.f32 %v284, %v1200
    %v1204 = vrot.slane %v1202, 4
    %v1206 = vsel %vm267, %v1123, %v1204
    %v1207 = vxor.u32 %v1206, 2147483648
    %v1208 = vmul.f32 %v1207, 1.442695
    %v1209 = vpow.pop %v1208
    %v1210 = vadd.f32 %v1209, 1.0
    %v1211 = vrcp.pop %v1210
    %v1212 = vmul.f32 1.0, %v1211
    %v1213 = vtanh.pop %v1206
    %v1214 = vmul.f32 %v1212, %v1041
    %1216 = vrot.lane.b32.xlu0 %v1213, 64
    %v1217 = vpop.permute.xlu0 %1216
    %v1219 = vmul.f32 %v1212, %v1217
    %1221 = vrot.lane.b32.xlu0 %v1219, 32
    %v1222 = vpop.permute.xlu0 %1221
    %v1224 = vadd.f32 %v1214, %v1222
    %v1225 = vtanh.pop %v1224
    %1227 = vrot.lane.b32.xlu0 %v1225, 64
    %v1228 = vpop.permute.xlu0 %1227
    %v1230 = vmul.f32 %v1212, %v1228
    %1232 = vrot.lane.b32.xlu0 %v1230, 32
    %v1233 = vpop.permute.xlu0 %1232
    %v1234 = vsel %vm307, %v1233, 0
    %1236 = vmatprep.subr.mxu0 0.0
    %1237 = vmatpush1.msra.mxu0 %v299
    %1238 = vmatprep.subr.mxu0 0.0
    %1239 = vmatpush1.msra.mxu0 %v300
    %1240 = vmatprep.subr.mxu0 0.0
    %1241 = vmatpush1.msra.mxu0 %v301
    %1242 = vmatprep.subr.mxu0 0.0
    %1243 = vmatpush1.msra.mxu0 %v302
    %1244 = vmatprep.subr.mxu0 0.0
    %1245 = vmatpush1.msra.mxu0 0.0
    %1246 = vmatprep.subr.mxu0 0.0
    %1247 = vmatpush1.msra.mxu0 0.0
    %1248 = vmatprep.subr.mxu0 0.0
    %1249 = vmatpush1.msra.mxu0 0.0
    %1250 = vmatprep.subr.mxu0 0.0
    %1251 = vmatpush1.msra.mxu0 0.0
    %1252 = vmatprep.subr.mxu0 0.0
    %1253 = vmatpush1.msra.mxu0 0.0
    %1254 = vmatprep.subr.mxu0 0.0
    %1255 = vmatpush1.msra.mxu0 0.0
    %1256 = vmatprep.subr.mxu0 0.0
    %1257 = vmatpush1.msra.mxu0 0.0
    %1258 = vmatprep.subr.mxu0 0.0
    %1259 = vmatpush1.msra.mxu0 0.0
    %1260 = vmatprep.subr.mxu0 0.0
    %1261 = vmatpush1.msra.mxu0 0.0
    %1262 = vmatprep.subr.mxu0 0.0
    %1263 = vmatpush1.msra.mxu0 0.0
    %1264 = vmatprep.subr.mxu0 0.0
    %1265 = vmatpush1.msra.mxu0 0.0
    %1266 = vmatprep.subr.mxu0 0.0
    %1267 = vmatpush1.msra.mxu0 0.0
    %1268 = vmatprep.subr.mxu0 0.0
    %1269 = vmatpush1.msra.mxu0 0.0
    %1270 = vmatprep.subr.mxu0 0.0
    %1271 = vmatpush1.msra.mxu0 0.0
    %1272 = vmatprep.subr.mxu0 0.0
    %1273 = vmatpush1.msra.mxu0 0.0
    %1274 = vmatprep.subr.mxu0 0.0
    %1275 = vmatpush1.msra.mxu0 0.0
    %1276 = vmatprep.subr.mxu0 0.0
    %1277 = vmatpush1.msra.mxu0 0.0
    %1278 = vmatprep.subr.mxu0 0.0
    %1279 = vmatpush1.msra.mxu0 0.0
    %1280 = vmatprep.subr.mxu0 0.0
    %1281 = vmatpush1.msra.mxu0 0.0
    %1282 = vmatprep.subr.mxu0 0.0
    %1283 = vmatpush1.msra.mxu0 0.0
    %1284 = vmatprep.subr.mxu0 0.0
    %1285 = vmatpush1.msra.mxu0 0.0
    %1286 = vmatprep.subr.mxu0 0.0
    %1287 = vmatpush1.msra.mxu0 0.0
    %1288 = vmatprep.subr.mxu0 0.0
    %1289 = vmatpush1.msra.mxu0 0.0
    %1290 = vmatprep.subr.mxu0 0.0
    %1291 = vmatpush1.msra.mxu0 0.0
    %1292 = vmatprep.subr.mxu0 0.0
    %1293 = vmatpush1.msra.mxu0 0.0
    %1294 = vmatprep.subr.mxu0 0.0
    %1295 = vmatpush1.msra.mxu0 0.0
    %1296 = vmatprep.subr.mxu0 0.0
    %1297 = vmatpush1.msra.mxu0 0.0
    %1298 = vmatprep.subr.mxu0 0.0
    %1299 = vmatpush1.msra.mxu0 0.0
    %1300 = vmatprep.mubr.f32.mxu0 0.0
    %1301 = vmatmul.mubr.f32.gmra.mrb[0].mxu0 %v1234
    %v1302 = vpop.f32.mrb[0].mxu0
    %v1303 = vadd.f32 0.0, %v1302
    %v1304 = vpop.f32.mrb[0].mxu0
    %1305 = vdwg.mxu0
    %v1307 = vrot.slane %v1303, 6
    %v1309 = vadd.f32 %v297, %v1307
    %v1310 = vrot.slane %v1230, 2
    %1311 = vrot.lane.b32.xlu0 %v1310, 32
    %v1312 = vpop.permute.xlu0 %1311
    %v1313 = vsel %vm307, %v1312, 0
    %1315 = vmatprep.subr.mxu0 0.0
    %1316 = vmatpush1.msra.mxu0 %v303
    %1317 = vmatprep.subr.mxu0 0.0
    %1318 = vmatpush1.msra.mxu0 %v304
    %1319 = vmatprep.subr.mxu0 0.0
    %1320 = vmatpush1.msra.mxu0 %v305
    %1321 = vmatprep.subr.mxu0 0.0
    %1322 = vmatpush1.msra.mxu0 %v306
    %1323 = vmatprep.subr.mxu0 0.0
    %1324 = vmatpush1.msra.mxu0 0.0
    %1325 = vmatprep.subr.mxu0 0.0
    %1326 = vmatpush1.msra.mxu0 0.0
    %1327 = vmatprep.subr.mxu0 0.0
    %1328 = vmatpush1.msra.mxu0 0.0
    %1329 = vmatprep.subr.mxu0 0.0
    %1330 = vmatpush1.msra.mxu0 0.0
    %1331 = vmatprep.subr.mxu0 0.0
    %1332 = vmatpush1.msra.mxu0 0.0
    %1333 = vmatprep.subr.mxu0 0.0
    %1334 = vmatpush1.msra.mxu0 0.0
    %1335 = vmatprep.subr.mxu0 0.0
    %1336 = vmatpush1.msra.mxu0 0.0
    %1337 = vmatprep.subr.mxu0 0.0
    %1338 = vmatpush1.msra.mxu0 0.0
    %1339 = vmatprep.subr.mxu0 0.0
    %1340 = vmatpush1.msra.mxu0 0.0
    %1341 = vmatprep.subr.mxu0 0.0
    %1342 = vmatpush1.msra.mxu0 0.0
    %1343 = vmatprep.subr.mxu0 0.0
    %1344 = vmatpush1.msra.mxu0 0.0
    %1345 = vmatprep.subr.mxu0 0.0
    %1346 = vmatpush1.msra.mxu0 0.0
    %1347 = vmatprep.subr.mxu0 0.0
    %1348 = vmatpush1.msra.mxu0 0.0
    %1349 = vmatprep.subr.mxu0 0.0
    %1350 = vmatpush1.msra.mxu0 0.0
    %1351 = vmatprep.subr.mxu0 0.0
    %1352 = vmatpush1.msra.mxu0 0.0
    %1353 = vmatprep.subr.mxu0 0.0
    %1354 = vmatpush1.msra.mxu0 0.0
    %1355 = vmatprep.subr.mxu0 0.0
    %1356 = vmatpush1.msra.mxu0 0.0
    %1357 = vmatprep.subr.mxu0 0.0
    %1358 = vmatpush1.msra.mxu0 0.0
    %1359 = vmatprep.subr.mxu0 0.0
    %1360 = vmatpush1.msra.mxu0 0.0
    %1361 = vmatprep.subr.mxu0 0.0
    %1362 = vmatpush1.msra.mxu0 0.0
    %1363 = vmatprep.subr.mxu0 0.0
    %1364 = vmatpush1.msra.mxu0 0.0
    %1365 = vmatprep.subr.mxu0 0.0
    %1366 = vmatpush1.msra.mxu0 0.0
    %1367 = vmatprep.subr.mxu0 0.0
    %1368 = vmatpush1.msra.mxu0 0.0
    %1369 = vmatprep.subr.mxu0 0.0
    %1370 = vmatpush1.msra.mxu0 0.0
    %1371 = vmatprep.subr.mxu0 0.0
    %1372 = vmatpush1.msra.mxu0 0.0
    %1373 = vmatprep.subr.mxu0 0.0
    %1374 = vmatpush1.msra.mxu0 0.0
    %1375 = vmatprep.subr.mxu0 0.0
    %1376 = vmatpush1.msra.mxu0 0.0
    %1377 = vmatprep.subr.mxu0 0.0
    %1378 = vmatpush1.msra.mxu0 0.0
    %1379 = vmatprep.mubr.f32.mxu0 0.0
    %1380 = vmatmul.mubr.f32.gmra.mrb[0].mxu0 %v1313
    %v1381 = vpop.f32.mrb[0].mxu0
    %v1382 = vadd.f32 0.0, %v1381
    %v1383 = vpop.f32.mrb[0].mxu0
    %1384 = vdwg.mxu0
    %v1386 = vrot.slane %v1382, 4
    %v1388 = vadd.f32 %v284, %v1386
    %v1390 = vrot.slane %v1309, 2
    %v1393 = vrot.slane %v1388, 2
    %v1395 = vsel %vm267, %v1390, %v1393
    %v1396 = vxor.u32 %v1395, 2147483648
    %v1397 = vmul.f32 %v1396, 1.442695
    %v1398 = vpow.pop %v1397
    %v1399 = vadd.f32 %v1398, 1.0
    %v1400 = vrcp.pop %v1399
    %v1401 = vmul.f32 1.0, %v1400
    %v1402 = vtanh.pop %v1395
    %v1403 = vmul.f32 %v1401, %v1224
    %1405 = vrot.lane.b32.xlu0 %v1402, 64
    %v1406 = vpop.permute.xlu0 %1405
    %v1408 = vmul.f32 %v1401, %v1406
    %1410 = vrot.lane.b32.xlu0 %v1408, 32
    %v1411 = vpop.permute.xlu0 %1410
    %v1413 = vadd.f32 %v1403, %v1411
    %v1414 = vtanh.pop %v1413
    %1416 = vrot.lane.b32.xlu0 %v1414, 64
    %v1417 = vpop.permute.xlu0 %1416
    %v1419 = vmul.f32 %v1401, %v1417
    %1421 = vrot.lane.b32.xlu0 %v1419, 32
    %v1422 = vpop.permute.xlu0 %1421
    %v1423 = vsel %vm307, %v1422, 0
    %1425 = vmatprep.subr.mxu0 0.0
    %1426 = vmatpush1.msra.mxu0 %v299
    %1427 = vmatprep.subr.mxu0 0.0
    %1428 = vmatpush1.msra.mxu0 %v300
    %1429 = vmatprep.subr.mxu0 0.0
    %1430 = vmatpush1.msra.mxu0 %v301
    %1431 = vmatprep.subr.mxu0 0.0
    %1432 = vmatpush1.msra.mxu0 %v302
    %1433 = vmatprep.subr.mxu0 0.0
    %1434 = vmatpush1.msra.mxu0 0.0
    %1435 = vmatprep.subr.mxu0 0.0
    %1436 = vmatpush1.msra.mxu0 0.0
    %1437 = vmatprep.subr.mxu0 0.0
    %1438 = vmatpush1.msra.mxu0 0.0
    %1439 = vmatprep.subr.mxu0 0.0
    %1440 = vmatpush1.msra.mxu0 0.0
    %1441 = vmatprep.subr.mxu0 0.0
    %1442 = vmatpush1.msra.mxu0 0.0
    %1443 = vmatprep.subr.mxu0 0.0
    %1444 = vmatpush1.msra.mxu0 0.0
    %1445 = vmatprep.subr.mxu0 0.0
    %1446 = vmatpush1.msra.mxu0 0.0
    %1447 = vmatprep.subr.mxu0 0.0
    %1448 = vmatpush1.msra.mxu0 0.0
    %1449 = vmatprep.subr.mxu0 0.0
    %1450 = vmatpush1.msra.mxu0 0.0
    %1451 = vmatprep.subr.mxu0 0.0
    %1452 = vmatpush1.msra.mxu0 0.0
    %1453 = vmatprep.subr.mxu0 0.0
    %1454 = vmatpush1.msra.mxu0 0.0
    %1455 = vmatprep.subr.mxu0 0.0
    %1456 = vmatpush1.msra.mxu0 0.0
    %1457 = vmatprep.subr.mxu0 0.0
    %1458 = vmatpush1.msra.mxu0 0.0
    %1459 = vmatprep.subr.mxu0 0.0
    %1460 = vmatpush1.msra.mxu0 0.0
    %1461 = vmatprep.subr.mxu0 0.0
    %1462 = vmatpush1.msra.mxu0 0.0
    %1463 = vmatprep.subr.mxu0 0.0
    %1464 = vmatpush1.msra.mxu0 0.0
    %1465 = vmatprep.subr.mxu0 0.0
    %1466 = vmatpush1.msra.mxu0 0.0
    %1467 = vmatprep.subr.mxu0 0.0
    %1468 = vmatpush1.msra.mxu0 0.0
    %1469 = vmatprep.subr.mxu0 0.0
    %1470 = vmatpush1.msra.mxu0 0.0
    %1471 = vmatprep.subr.mxu0 0.0
    %1472 = vmatpush1.msra.mxu0 0.0
    %1473 = vmatprep.subr.mxu0 0.0
    %1474 = vmatpush1.msra.mxu0 0.0
    %1475 = vmatprep.subr.mxu0 0.0
    %1476 = vmatpush1.msra.mxu0 0.0
    %1477 = vmatprep.subr.mxu0 0.0
    %1478 = vmatpush1.msra.mxu0 0.0
    %1479 = vmatprep.subr.mxu0 0.0
    %1480 = vmatpush1.msra.mxu0 0.0
    %1481 = vmatprep.subr.mxu0 0.0
    %1482 = vmatpush1.msra.mxu0 0.0
    %1483 = vmatprep.subr.mxu0 0.0
    %1484 = vmatpush1.msra.mxu0 0.0
    %1485 = vmatprep.subr.mxu0 0.0
    %1486 = vmatpush1.msra.mxu0 0.0
    %1487 = vmatprep.subr.mxu0 0.0
    %1488 = vmatpush1.msra.mxu0 0.0
    %1489 = vmatprep.mubr.f32.mxu0 0.0
    %1490 = vmatmul.mubr.f32.gmra.mrb[0].mxu0 %v1423
    %v1491 = vpop.f32.mrb[0].mxu0
    %v1492 = vadd.f32 0.0, %v1491
    %v1493 = vpop.f32.mrb[0].mxu0
    %1494 = vdwg.mxu0
    %v1496 = vrot.slane %v1492, 4
    %v1498 = vadd.f32 %v297, %v1496
    %v1499 = vrot.slane %v1419, 2
    %1500 = vrot.lane.b32.xlu0 %v1499, 32
    %v1501 = vpop.permute.xlu0 %1500
    %v1502 = vsel %vm307, %v1501, 0
    %1504 = vmatprep.subr.mxu0 0.0
    %1505 = vmatpush1.msra.mxu0 %v303
    %1506 = vmatprep.subr.mxu0 0.0
    %1507 = vmatpush1.msra.mxu0 %v304
    %1508 = vmatprep.subr.mxu0 0.0
    %1509 = vmatpush1.msra.mxu0 %v305
    %1510 = vmatprep.subr.mxu0 0.0
    %1511 = vmatpush1.msra.mxu0 %v306
    %1512 = vmatprep.subr.mxu0 0.0
    %1513 = vmatpush1.msra.mxu0 0.0
    %1514 = vmatprep.subr.mxu0 0.0
    %1515 = vmatpush1.msra.mxu0 0.0
    %1516 = vmatprep.subr.mxu0 0.0
    %1517 = vmatpush1.msra.mxu0 0.0
    %1518 = vmatprep.subr.mxu0 0.0
    %1519 = vmatpush1.msra.mxu0 0.0
    %1520 = vmatprep.subr.mxu0 0.0
    %1521 = vmatpush1.msra.mxu0 0.0
    %1522 = vmatprep.subr.mxu0 0.0
    %1523 = vmatpush1.msra.mxu0 0.0
    %1524 = vmatprep.subr.mxu0 0.0
    %1525 = vmatpush1.msra.mxu0 0.0
    %1526 = vmatprep.subr.mxu0 0.0
    %1527 = vmatpush1.msra.mxu0 0.0
    %1528 = vmatprep.subr.mxu0 0.0
    %1529 = vmatpush1.msra.mxu0 0.0
    %1530 = vmatprep.subr.mxu0 0.0
    %1531 = vmatpush1.msra.mxu0 0.0
    %1532 = vmatprep.subr.mxu0 0.0
    %1533 = vmatpush1.msra.mxu0 0.0
    %1534 = vmatprep.subr.mxu0 0.0
    %1535 = vmatpush1.msra.mxu0 0.0
    %1536 = vmatprep.subr.mxu0 0.0
    %1537 = vmatpush1.msra.mxu0 0.0
    %1538 = vmatprep.subr.mxu0 0.0
    %1539 = vmatpush1.msra.mxu0 0.0
    %1540 = vmatprep.subr.mxu0 0.0
    %1541 = vmatpush1.msra.mxu0 0.0
    %1542 = vmatprep.subr.mxu0 0.0
    %1543 = vmatpush1.msra.mxu0 0.0
    %1544 = vmatprep.subr.mxu0 0.0
    %1545 = vmatpush1.msra.mxu0 0.0
    %1546 = vmatprep.subr.mxu0 0.0
    %1547 = vmatpush1.msra.mxu0 0.0
    %1548 = vmatprep.subr.mxu0 0.0
    %1549 = vmatpush1.msra.mxu0 0.0
    %1550 = vmatprep.subr.mxu0 0.0
    %1551 = vmatpush1.msra.mxu0 0.0
    %1552 = vmatprep.subr.mxu0 0.0
    %1553 = vmatpush1.msra.mxu0 0.0
    %1554 = vmatprep.subr.mxu0 0.0
    %1555 = vmatpush1.msra.mxu0 0.0
    %1556 = vmatprep.subr.mxu0 0.0
    %1557 = vmatpush1.msra.mxu0 0.0
    %1558 = vmatprep.subr.mxu0 0.0
    %1559 = vmatpush1.msra.mxu0 0.0
    %1560 = vmatprep.subr.mxu0 0.0
    %1561 = vmatpush1.msra.mxu0 0.0
    %1562 = vmatprep.subr.mxu0 0.0
    %1563 = vmatpush1.msra.mxu0 0.0
    %1564 = vmatprep.subr.mxu0 0.0
    %1565 = vmatpush1.msra.mxu0 0.0
    %1566 = vmatprep.subr.mxu0 0.0
    %1567 = vmatpush1.msra.mxu0 0.0
    %1568 = vmatprep.mubr.f32.mxu0 0.0
    %1569 = vmatmul.mubr.f32.gmra.mrb[0].mxu0 %v1502
    %v1570 = vpop.f32.mrb[0].mxu0
    %v1571 = vadd.f32 0.0, %v1570
    %v1572 = vpop.f32.mrb[0].mxu0
    %1573 = vdwg.mxu0
    %v1575 = vrot.slane %v1571, 6
    %v1577 = vadd.f32 %v284, %v1575
    %v1579 = vrot.slane %v1498, 4
    %v1581 = vsel %vm267, %v1579, %v1577
    %v1582 = vxor.u32 %v1581, 2147483648
    %v1583 = vmul.f32 %v1582, 1.442695
    %v1584 = vpow.pop %v1583
    %v1585 = vadd.f32 %v1584, 1.0
    %v1586 = vrcp.pop %v1585
    %v1587 = vmul.f32 1.0, %v1586
    %v1588 = vtanh.pop %v1581
    %v1589 = vmul.f32 %v1587, %v1413
    %1591 = vrot.lane.b32.xlu0 %v1588, 64
    %v1592 = vpop.permute.xlu0 %1591
    %v1594 = vmul.f32 %v1587, %v1592
    %1596 = vrot.lane.b32.xlu0 %v1594, 32
    %v1597 = vpop.permute.xlu0 %1596
    %v1599 = vadd.f32 %v1589, %v1597
    %v1600 = vtanh.pop %v1599
    %1602 = vrot.lane.b32.xlu0 %v1600, 64
    %v1603 = vpop.permute.xlu0 %1602
    %v1605 = vmul.f32 %v1587, %v1603
    %1607 = vrot.lane.b32.xlu0 %v1605, 32
    %v1608 = vpop.permute.xlu0 %1607
    %v1609 = vsel %vm307, %v1608, 0
    %1611 = vmatprep.subr.mxu0 0.0
    %1612 = vmatpush1.msra.mxu0 %v299
    %1613 = vmatprep.subr.mxu0 0.0
    %1614 = vmatpush1.msra.mxu0 %v300
    %1615 = vmatprep.subr.mxu0 0.0
    %1616 = vmatpush1.msra.mxu0 %v301
    %1617 = vmatprep.subr.mxu0 0.0
    %1618 = vmatpush1.msra.mxu0 %v302
    %1619 = vmatprep.subr.mxu0 0.0
    %1620 = vmatpush1.msra.mxu0 0.0
    %1621 = vmatprep.subr.mxu0 0.0
    %1622 = vmatpush1.msra.mxu0 0.0
    %1623 = vmatprep.subr.mxu0 0.0
    %1624 = vmatpush1.msra.mxu0 0.0
    %1625 = vmatprep.subr.mxu0 0.0
    %1626 = vmatpush1.msra.mxu0 0.0
    %1627 = vmatprep.subr.mxu0 0.0
    %1628 = vmatpush1.msra.mxu0 0.0
    %1629 = vmatprep.subr.mxu0 0.0
    %1630 = vmatpush1.msra.mxu0 0.0
    %1631 = vmatprep.subr.mxu0 0.0
    %1632 = vmatpush1.msra.mxu0 0.0
    %1633 = vmatprep.subr.mxu0 0.0
    %1634 = vmatpush1.msra.mxu0 0.0
    %1635 = vmatprep.subr.mxu0 0.0
    %1636 = vmatpush1.msra.mxu0 0.0
    %1637 = vmatprep.subr.mxu0 0.0
    %1638 = vmatpush1.msra.mxu0 0.0
    %1639 = vmatprep.subr.mxu0 0.0
    %1640 = vmatpush1.msra.mxu0 0.0
    %1641 = vmatprep.subr.mxu0 0.0
    %1642 = vmatpush1.msra.mxu0 0.0
    %1643 = vmatprep.subr.mxu0 0.0
    %1644 = vmatpush1.msra.mxu0 0.0
    %1645 = vmatprep.subr.mxu0 0.0
    %1646 = vmatpush1.msra.mxu0 0.0
    %1647 = vmatprep.subr.mxu0 0.0
    %1648 = vmatpush1.msra.mxu0 0.0
    %1649 = vmatprep.subr.mxu0 0.0
    %1650 = vmatpush1.msra.mxu0 0.0
    %1651 = vmatprep.subr.mxu0 0.0
    %1652 = vmatpush1.msra.mxu0 0.0
    %1653 = vmatprep.subr.mxu0 0.0
    %1654 = vmatpush1.msra.mxu0 0.0
    %1655 = vmatprep.subr.mxu0 0.0
    %1656 = vmatpush1.msra.mxu0 0.0
    %1657 = vmatprep.subr.mxu0 0.0
    %1658 = vmatpush1.msra.mxu0 0.0
    %1659 = vmatprep.subr.mxu0 0.0
    %1660 = vmatpush1.msra.mxu0 0.0
    %1661 = vmatprep.subr.mxu0 0.0
    %1662 = vmatpush1.msra.mxu0 0.0
    %1663 = vmatprep.subr.mxu0 0.0
    %1664 = vmatpush1.msra.mxu0 0.0
    %1665 = vmatprep.subr.mxu0 0.0
    %1666 = vmatpush1.msra.mxu0 0.0
    %1667 = vmatprep.subr.mxu0 0.0
    %1668 = vmatpush1.msra.mxu0 0.0
    %1669 = vmatprep.subr.mxu0 0.0
    %1670 = vmatpush1.msra.mxu0 0.0
    %1671 = vmatprep.subr.mxu0 0.0
    %1672 = vmatpush1.msra.mxu0 0.0
    %1673 = vmatprep.subr.mxu0 0.0
    %1674 = vmatpush1.msra.mxu0 0.0
    %1675 = vmatprep.mubr.f32.mxu0 0.0
    %1676 = vmatmul.mubr.f32.gmra.mrb[0].mxu0 %v1609
    %v1677 = vpop.f32.mrb[0].mxu0
    %v1678 = vadd.f32 0.0, %v1677
    %v1679 = vpop.f32.mrb[0].mxu0
    %1680 = vdwg.mxu0
    %v1682 = vrot.slane %v1678, 2
    %v1684 = vadd.f32 %v297, %v1682
    %v1685 = vrot.slane %v1605, 2
    %1686 = vrot.lane.b32.xlu0 %v1685, 32
    %v1687 = vpop.permute.xlu0 %1686
    %v1688 = vsel %vm307, %v1687, 0
    %1690 = vmatprep.subr.mxu0 0.0
    %1691 = vmatpush1.msra.mxu0 %v303
    %1692 = vmatprep.subr.mxu0 0.0
    %1693 = vmatpush1.msra.mxu0 %v304
    %1694 = vmatprep.subr.mxu0 0.0
    %1695 = vmatpush1.msra.mxu0 %v305
    %1696 = vmatprep.subr.mxu0 0.0
    %1697 = vmatpush1.msra.mxu0 %v306
    %1698 = vmatprep.subr.mxu0 0.0
    %1699 = vmatpush1.msra.mxu0 0.0
    %1700 = vmatprep.subr.mxu0 0.0
    %1701 = vmatpush1.msra.mxu0 0.0
    %1702 = vmatprep.subr.mxu0 0.0
    %1703 = vmatpush1.msra.mxu0 0.0
    %1704 = vmatprep.subr.mxu0 0.0
    %1705 = vmatpush1.msra.mxu0 0.0
    %1706 = vmatprep.subr.mxu0 0.0
    %1707 = vmatpush1.msra.mxu0 0.0
    %1708 = vmatprep.subr.mxu0 0.0
    %1709 = vmatpush1.msra.mxu0 0.0
    %1710 = vmatprep.subr.mxu0 0.0
    %1711 = vmatpush1.msra.mxu0 0.0
    %1712 = vmatprep.subr.mxu0 0.0
    %1713 = vmatpush1.msra.mxu0 0.0
    %1714 = vmatprep.subr.mxu0 0.0
    %1715 = vmatpush1.msra.mxu0 0.0
    %1716 = vmatprep.subr.mxu0 0.0
    %1717 = vmatpush1.msra.mxu0 0.0
    %1718 = vmatprep.subr.mxu0 0.0
    %1719 = vmatpush1.msra.mxu0 0.0
    %1720 = vmatprep.subr.mxu0 0.0
    %1721 = vmatpush1.msra.mxu0 0.0
    %1722 = vmatprep.subr.mxu0 0.0
    %1723 = vmatpush1.msra.mxu0 0.0
    %1724 = vmatprep.subr.mxu0 0.0
    %1725 = vmatpush1.msra.mxu0 0.0
    %1726 = vmatprep.subr.mxu0 0.0
    %1727 = vmatpush1.msra.mxu0 0.0
    %1728 = vmatprep.subr.mxu0 0.0
    %1729 = vmatpush1.msra.mxu0 0.0
    %1730 = vmatprep.subr.mxu0 0.0
    %1731 = vmatpush1.msra.mxu0 0.0
    %1732 = vmatprep.subr.mxu0 0.0
    %1733 = vmatpush1.msra.mxu0 0.0
    %1734 = vmatprep.subr.mxu0 0.0
    %1735 = vmatpush1.msra.mxu0 0.0
    %1736 = vmatprep.subr.mxu0 0.0
    %1737 = vmatpush1.msra.mxu0 0.0
    %1738 = vmatprep.subr.mxu0 0.0
    %1739 = vmatpush1.msra.mxu0 0.0
    %1740 = vmatprep.subr.mxu0 0.0
    %1741 = vmatpush1.msra.mxu0 0.0
    %1742 = vmatprep.subr.mxu0 0.0
    %1743 = vmatpush1.msra.mxu0 0.0
    %1744 = vmatprep.subr.mxu0 0.0
    %1745 = vmatpush1.msra.mxu0 0.0
    %1746 = vmatprep.subr.mxu0 0.0
    %1747 = vmatpush1.msra.mxu0 0.0
    %1748 = vmatprep.subr.mxu0 0.0
    %1749 = vmatpush1.msra.mxu0 0.0
    %1750 = vmatprep.subr.mxu0 0.0
    %1751 = vmatpush1.msra.mxu0 0.0
    %1752 = vmatprep.subr.mxu0 0.0
    %1753 = vmatpush1.msra.mxu0 0.0
    %1754 = vmatprep.mubr.f32.mxu0 0.0
    %1755 = vmatmul.mubr.f32.gmra.mrb[0].mxu0 %v1688
    %v1756 = vpop.f32.mrb[0].mxu0
    %v1757 = vadd.f32 0.0, %v1756
    %v1758 = vpop.f32.mrb[0].mxu0
    %1759 = vdwg.mxu0
    %v1760 = vadd.f32 %v284, %v1757
    %v1762 = vrot.slane %v1684, 6
    %v1765 = vrot.slane %v1760, 6
    %v1767 = vsel %vm267, %v1762, %v1765
    %v1768 = vxor.u32 %v1767, 2147483648
    %v1769 = vmul.f32 %v1768, 1.442695
    %v1770 = vpow.pop %v1769
    %v1771 = vadd.f32 %v1770, 1.0
    %v1772 = vrcp.pop %v1771
    %v1773 = vmul.f32 1.0, %v1772
    %v1774 = vtanh.pop %v1767
    %v1775 = vmul.f32 %v1773, %v1599
    %1777 = vrot.lane.b32.xlu0 %v1774, 64
    %v1778 = vpop.permute.xlu0 %1777
    %v1780 = vmul.f32 %v1773, %v1778
    %1782 = vrot.lane.b32.xlu0 %v1780, 32
    %v1783 = vpop.permute.xlu0 %1782
    %v1785 = vadd.f32 %v1775, %v1783
    %v1786 = vtanh.pop %v1785
    %1788 = vrot.lane.b32.xlu0 %v1786, 64
    %v1789 = vpop.permute.xlu0 %1788
    %v1791 = vmul.f32 %v1773, %v1789
    %v1792 = vrot.slane %v675, 7
    %v1794 = vrot.slane %v861, 6
    %v1796 = vrot.slane %v1047, 5
    %v1798 = vrot.slane %v1230, 4
    %v1800 = vrot.slane %v1419, 3
    %v1804 = vrot.slane %v1791, 1
    %v1806 = vsel %vm264, %v486, %v1792
    %v1807 = vsel %vm267, %v1806, %v1794
    %v1808 = vsel %vm270, %v1807, %v1796
    %v1809 = vsel %vm273, %v1808, %v1798
    %v1810 = vsel %vm276, %v1809, %v1800
    %v1811 = vsel %vm279, %v1810, %v1685
    %v1812 = vsel %vm282, %v1811, %v1804
    %v1813 = vrot.slane %v486, 1
    %v1815 = vrot.slane %v861, 7
    %v1817 = vrot.slane %v1047, 6
    %v1819 = vrot.slane %v1230, 5
    %v1821 = vrot.slane %v1419, 4
    %v1823 = vrot.slane %v1605, 3
    %v1825 = vrot.slane %v1791, 2
    %v1827 = vsel %vm264, %v1813, %v675
    %v1828 = vsel %vm267, %v1827, %v1815
    %v1829 = vsel %vm270, %v1828, %v1817
    %v1830 = vsel %vm273, %v1829, %v1819
    %v1831 = vsel %vm276, %v1830, %v1821
    %v1832 = vsel %vm279, %v1831, %v1823
    %v1833 = vsel %vm282, %v1832, %v1825
    %v1834 = vrot.slane %v1605, 1
    %v1836 = vrot.slane %v1230, 7
    %v1838 = vrot.slane %v861, 5
    %v1840 = vrot.slane %v675, 4
    %v1842 = vrot.slane %v486, 3
    %v1844 = vsel %vm264, %v1825, %v1834
    %v1845 = vsel %vm267, %v1844, %v1419
    %v1846 = vsel %vm270, %v1845, %v1836
    %v1847 = vsel %vm273, %v1846, %v1817
    %v1848 = vsel %vm276, %v1847, %v1838
    %v1849 = vsel %vm279, %v1848, %v1840
    %v1850 = vsel %vm282, %v1849, %v1842
    %v1851 = vrot.slane %v1791, 3
    %v1853 = vrot.slane %v1419, 1
    %v1855 = vrot.slane %v1047, 7
    %v1857 = vrot.slane %v675, 5
    %v1859 = vrot.slane %v486, 4
    %v1861 = vsel %vm264, %v1851, %v1685
    %v1862 = vsel %vm267, %v1861, %v1853
    %v1863 = vsel %vm270, %v1862, %v1230
    %v1864 = vsel %vm273, %v1863, %v1855
    %v1865 = vsel %vm276, %v1864, %v1794
    %v1866 = vsel %vm279, %v1865, %v1857
    %v1867 = vsel %vm282, %v1866, %v1859
    %1870 = vrot.lane.b32.xlu0 %v1812, 32
    %v1871 = vpop.permute.xlu0 %1870
    %1872 = vrot.lane.b32.xlu0 %v1833, 32
    %v1873 = vpop.permute.xlu0 %1872
    %1878 = vrot.lane.b32.xlu0 %v1850, 64
    %v1879 = vpop.permute.xlu0 %1878
    %1880 = vrot.lane.b32.xlu0 %v1867, 64
    %v1881 = vpop.permute.xlu0 %1880
    %v1884 = vsel %vm307, %v1871, %v1879
    %v1885 = vsel %vm307, %v1873, %v1881
    %v1886 = vld [vmem:[#allocation6] sm:$0xff]
    %v1887 = vld [vmem:[#allocation6 + $0x8] sm:$0xff]
    %v1888 = vld [vmem:[#allocation6 + $0x10] sm:$0xff]
    %v1889 = vld [vmem:[#allocation6 + $0x18] sm:$0xff]
    %v1890 = vld [vmem:[#allocation6 + $0x20] sm:$0xff]
    %v1891 = vld [vmem:[#allocation6 + $0x28] sm:$0xff]
    %v1892 = vld [vmem:[#allocation6 + $0x30] sm:$0xff]
    %v1893 = vld [vmem:[#allocation6 + $0x38] sm:$0xff]
    %v1894 = vld [vmem:[%s6] sm:$0x1]
    %v1896 = vlaneseq
    %v1897 = vshrl.u32 %v1896, 7
    %v1898 = vsub.s32 0, %v1897
    %v1899 = vrot.slane %v1894, %v1898
    %vm1901 = vcmask 523264
    %v1903 = vsel %vm1901, %v1884, 0
    %v1906 = vsel %vm1901, %v1885, 0
    %1908 = vmatprep.subr.mxu0 0.0
    %1909 = vmatpush1.msra.mxu0 %v1886
    %1910 = vmatprep.subr.mxu0 0.0
    %1911 = vmatpush1.msra.mxu0 %v1887
    %1912 = vmatprep.subr.mxu0 0.0
    %1913 = vmatpush1.msra.mxu0 %v1888
    %1914 = vmatprep.subr.mxu0 0.0
    %1915 = vmatpush1.msra.mxu0 %v1889
    %1916 = vmatprep.subr.mxu0 0.0
    %1917 = vmatpush1.msra.mxu0 %v1890
    %1918 = vmatprep.subr.mxu0 0.0
    %1919 = vmatpush1.msra.mxu0 %v1891
    %1920 = vmatprep.subr.mxu0 0.0
    %1921 = vmatpush1.msra.mxu0 %v1892
    %1922 = vmatprep.subr.mxu0 0.0
    %1923 = vmatpush1.msra.mxu0 %v1893
    %1924 = vmatprep.subr.mxu0 0.0
    %1925 = vmatpush1.msra.mxu0 0.0
    %1926 = vmatprep.subr.mxu0 0.0
    %1927 = vmatpush1.msra.mxu0 0.0
    %1928 = vmatprep.subr.mxu0 0.0
    %1929 = vmatpush1.msra.mxu0 0.0
    %1930 = vmatprep.subr.mxu0 0.0
    %1931 = vmatpush1.msra.mxu0 0.0
    %1932 = vmatprep.subr.mxu0 0.0
    %1933 = vmatpush1.msra.mxu0 0.0
    %1934 = vmatprep.subr.mxu0 0.0
    %1935 = vmatpush1.msra.mxu0 0.0
    %1936 = vmatprep.subr.mxu0 0.0
    %1937 = vmatpush1.msra.mxu0 0.0
    %1938 = vmatprep.subr.mxu0 0.0
    %1939 = vmatpush1.msra.mxu0 0.0
    %1940 = vmatprep.subr.mxu0 0.0
    %1941 = vmatpush1.msra.mxu0 0.0
    %1942 = vmatprep.subr.mxu0 0.0
    %1943 = vmatpush1.msra.mxu0 0.0
    %1944 = vmatprep.subr.mxu0 0.0
    %1945 = vmatpush1.msra.mxu0 0.0
    %1946 = vmatprep.subr.mxu0 0.0
    %1947 = vmatpush1.msra.mxu0 0.0
    %1948 = vmatprep.subr.mxu0 0.0
    %1949 = vmatpush1.msra.mxu0 0.0
    %1950 = vmatprep.subr.mxu0 0.0
    %1951 = vmatpush1.msra.mxu0 0.0
    %1952 = vmatprep.subr.mxu0 0.0
    %1953 = vmatpush1.msra.mxu0 0.0
    %1954 = vmatprep.subr.mxu0 0.0
    %1955 = vmatpush1.msra.mxu0 0.0
    %1956 = vmatprep.subr.mxu0 0.0
    %1957 = vmatpush1.msra.mxu0 0.0
    %1958 = vmatprep.subr.mxu0 0.0
    %1959 = vmatpush1.msra.mxu0 0.0
    %1960 = vmatprep.subr.mxu0 0.0
    %1961 = vmatpush1.msra.mxu0 0.0
    %1962 = vmatprep.subr.mxu0 0.0
    %1963 = vmatpush1.msra.mxu0 0.0
    %1964 = vmatprep.subr.mxu0 0.0
    %1965 = vmatpush1.msra.mxu0 0.0
    %1966 = vmatprep.subr.mxu0 0.0
    %1967 = vmatpush1.msra.mxu0 0.0
    %1968 = vmatprep.subr.mxu0 0.0
    %1969 = vmatpush1.msra.mxu0 0.0
    %1970 = vmatprep.subr.mxu0 0.0
    %1971 = vmatpush1.msra.mxu0 0.0
    %1972 = vmatprep.mubr.f32.mxu0 0.0
    %1973 = vmatmul.mubr.f32.gmra.mrb[0].mxu0 %v1903
    %v1974 = vpop.f32.mrb[0].mxu0
    %v1975 = vadd.f32 %v1899, %v1974
    %v1976 = vpop.f32.mrb[0].mxu0
    %1977 = vmatprep.mubr.f32.mxu0 0.0
    %1978 = vmatmul.mubr.f32.gmra.mrb[0].mxu0 %v1906
    %v1979 = vpop.f32.mrb[0].mxu0
    %v1980 = vadd.f32 %v1899, %v1979
    %v1981 = vpop.f32.mrb[0].mxu0
    %1982 = vdwg.mxu0
    %1983 = vst [vmem:[%s7] sm:$0xff] %v1975
    %1984 = vst [vmem:[%s7 + $0x8] sm:$0xff] %v1980
    // Predicated region
    $region42: #{grammar_checker_forward.1} parent=1 // pred_check
      _
    $region43: #{grammar_checker_forward.1} parent=1 // pred_check_branch
      %1986 = sbr.rel (0) target = $region45
    $region44: #{grammar_checker_forward.1} parent=1 // pred_region
      _
    $region45: #{grammar_checker_forward.1} parent=1 // pred_fallthru
      _
    // Predicated region
    $region46: #{grammar_checker_forward.1} parent=1 // pred_check
      _
    $region47: #{grammar_checker_forward.1} parent=1 // pred_check_branch
      %1988 = sbr.rel (0) target = $region49
    $region48: #{grammar_checker_forward.1} parent=1 // pred_region
      _
    $region49: #{grammar_checker_forward.1} parent=1 // pred_fallthru
      _
    %1989 = vsyncpa [#allocation3], 1
    %1990 = vsyncpa [#allocation5], 1

</llo_original>
